<compile_context>
chip_gen: v7x
topology: tpu7x:2x2x1
jax: 0.10.0
libtpu: 0.0.40
codegen_flags: <defaults>
</compile_context>

<pallas_src>
import functools
import math

import jax
import jax.numpy as jnp
from jax.experimental import pallas as pl
from jax.experimental.pallas import tpu as pltpu

EPS = 1e-5  # PyTorch LayerNorm default eps

# TODO(synk): PyTorch nn.GELU defaults to exact erf; tanh-approx GELU is used
# here (guaranteed EUP lowering).  Flip if exact-erf parity is required.
GELU_APPROXIMATE = True


def _layernorm(x, g, b):
    # x: (M, D) f32, g/b: (1, D) f32
    mu = jnp.mean(x, axis=-1, keepdims=True)
    var = jnp.mean((x - mu) ** 2, axis=-1, keepdims=True)
    return (x - mu) * jax.lax.rsqrt(var + EPS) * g + b


def decoder_kernel(x_ref, pos_ref,
                   wqkv_ref, wo_ref, w1_ref, w2_ref,
                   vecs_ref, bqkv_ref, b1_ref, norm_ref,
                   o_ref, *, num_heads):
    """Grid = (batch_block, layer).  One transformer block per step; the
    (Bt, N, D) activation block is carried in o_ref across the layer axis."""
    l = pl.program_id(1)
    n_layers = pl.num_programs(1)

    # Initialize the carried activation from the input on the first layer.
    @pl.when(l == 0)
    def _():
        o_ref[...] = x_ref[...]

    Bt, N, D = o_ref.shape
    M = Bt * N
    nh = num_heads
    dh = D // nh
    cd = wqkv_ref.dtype  # bf16 matmul-operand dtype

    # Consolidated per-layer vector params (rows of the (6, D) block).
    ln1_g, ln1_b = vecs_ref[0:1, :], vecs_ref[1:2, :]
    bo = vecs_ref[2:3, :]
    ln2_g, ln2_b = vecs_ref[3:4, :], vecs_ref[4:5, :]
    b2 = vecs_ref[5:6, :]

    # Decoder adds pos before every block; flatten to (M, D) for dense matmuls.
    x = (o_ref[...].astype(jnp.float32)
         + pos_ref[...].astype(jnp.float32)).reshape(M, D)

    # ---- Multi-head self-attention (pre-LN) ----
    # TODO(synk): padding_mask / attn_mask support (forward passes None here).
    h = _layernorm(x, ln1_g, ln1_b).astype(cd)
    # 1/sqrt(dh) is already folded into the q columns of wqkv / bqkv (wrapper).
    qkv = jnp.dot(h, wqkv_ref[...], preferred_element_type=jnp.float32) + bqkv_ref[...]
    q, k, v = qkv[:, 0:D], qkv[:, D:2 * D], qkv[:, 2 * D:3 * D]

    def split_heads(t):
        # (M, D) f32 -> (nh*Bt, N, dh) bf16, head-major leading batch.
        # Lane slices + stack on a new leading axis avoid rank-4 transposes.
        t = t.astype(cd).reshape(Bt, N, D)
        parts = [t[:, :, i * dh:(i + 1) * dh] for i in range(nh)]
        return jnp.stack(parts, axis=0).reshape(nh * Bt, N, dh)

    qh, kh, vh = split_heads(q), split_heads(k), split_heads(v)

    s = jnp.einsum('gqd,gkd->gqk', qh, kh,
                   preferred_element_type=jnp.float32)          # (nh*Bt, N, N)
    s = s - jnp.max(s, axis=-1, keepdims=True)
    p = jnp.exp(s)
    p = p * pl.reciprocal(jnp.sum(p, axis=-1, keepdims=True), approx=True)
    ctx = jnp.einsum('gqk,gkd->gqd', p.astype(cd), vh,
                     preferred_element_type=jnp.float32)        # (nh*Bt, N, dh)

    # Merge heads back to (M, D) via a lane concat (no transpose).
    ctx = ctx.astype(cd).reshape(nh, Bt, N, dh)
    ctx = jnp.concatenate([ctx[i] for i in range(nh)], axis=-1).reshape(M, D)

    attn = jnp.dot(ctx, wo_ref[...], preferred_element_type=jnp.float32) + bo
    x = x + attn

    # ---- MLP (pre-LN) ----
    h2 = _layernorm(x, ln2_g, ln2_b).astype(cd)
    hid = jnp.dot(h2, w1_ref[...], preferred_element_type=jnp.float32) + b1_ref[...]
    hid = jax.nn.gelu(hid, approximate=GELU_APPROXIMATE)
    mlp = jnp.dot(hid.astype(cd), w2_ref[...],
                  preferred_element_type=jnp.float32) + b2
    out = x + mlp

    @pl.when(l < n_layers - 1)
    def _():
        o_ref[...] = out.reshape(Bt, N, D).astype(o_ref.dtype)

    # Fused final LayerNorm on the last layer (per-token, so the optional
    # return_token_num slice commutes and is applied outside).
    @pl.when(l == n_layers - 1)
    def _():
        o_ref[...] = _layernorm(out, norm_ref[0:1, :], norm_ref[1:2, :]) \
            .reshape(Bt, N, D).astype(o_ref.dtype)


def transformer_decoder_forward(x, pos, params, num_heads, return_token_num=None,
                                compute_dtype=jnp.bfloat16):
    B, N, D = x.shape
    depth = params["wq"].shape[0]
    H = params["w1"].shape[-1]
    assert D % num_heads == 0
    dh = D // num_heads
    scale = 1.0 / math.sqrt(dh)

    # --- one-time wrapper-side packing of weights ---
    # scale folded into q projection; fused qkv; bf16 matmul operands.
    wqkv = jnp.concatenate([params["wq"] * scale, params["wk"], params["wv"]],
                           axis=-1).astype(compute_dtype)            # (depth, D, 3D)
    bqkv = jnp.concatenate([params["bq"] * scale, params["bk"], params["bv"]],
                           axis=-1)                                   # (depth, 1, 3D)
    wo = params["wo"].astype(compute_dtype)                           # (depth, D, D)
    w1 = params["w1"].astype(compute_dtype)                           # (depth, D, H)
    w2 = params["w2"].astype(compute_dtype)                           # (depth, H, D)
    vecs = jnp.concatenate([params["ln1_g"], params["ln1_b"], params["bo"],
                            params["ln2_g"], params["ln2_b"], params["b2"]],
                           axis=1)                                    # (depth, 6, D)
    b1 = params["b1"]                                                 # (depth, 1, H)
    norm = jnp.concatenate([params["norm_g"], params["norm_b"]], axis=0)  # (2, D)

    # --- VMEM-aware batch-block (Bt) sizing ---
    try:
        vmem_cap = int(pltpu.get_tpu_info().vmem_capacity_bytes)
    except Exception:
        vmem_cap = 64 << 20  # v7x-safe fallback
    usable = int(vmem_cap * 0.85)

    itemsize = jnp.dtype(compute_dtype).itemsize
    w_bytes = (4 * D * D + 2 * D * H) * itemsize          # per-layer matmul weights
    vec_bytes = (11 * D + H) * 4                          # per-layer vector params
    resident = 2 * (w_bytes + vec_bytes)                  # double-buffered streams

    per_bt = (6 * N * D                      # x / pos / out pipeline buffers
              + 12 * N * D                   # attention-path intermediates
              + 3 * N * H                    # fc1 / GELU intermediate
              + 3 * num_heads * N * N        # scores + probs
              ) * 4

    max_bt = max(1, (usable - resident) // per_bt)
    if B > 1:
        # keep >= 2 steps on the batch grid axis so v7x megacore still shards.
        max_bt = min(max_bt, max(1, B // 2))
    bt = 1
    for c in range(1, B + 1):
        if B % c == 0 and c <= max_bt:
            bt = c
    assert B % bt == 0

    vmem_limit = int(min(usable, max(resident + bt * per_bt + (8 << 20), 32 << 20)))

    # Advisory cost estimate for XLA scheduling around the custom call.
    flops = B * depth * N * (8 * D * D + 4 * N * D + 4 * D * H)
    transcendentals = B * depth * (num_heads * N * N + N * H)
    bytes_accessed = (3 * B * N * D * 4
                      + (B // bt) * depth * (w_bytes + vec_bytes))

    def act_spec():
        return pl.BlockSpec((bt, N, D), lambda b, l: (b, 0, 0))

    def wspec(r, c):
        # per-layer stacked param; leading depth axis squeezed out of the ref.
        return pl.BlockSpec((None, r, c), lambda b, l: (l, 0, 0))

    kern = functools.partial(decoder_kernel, num_heads=num_heads)

    out = pl.pallas_call(
        kern,
        out_shape=jax.ShapeDtypeStruct((B, N, D), x.dtype),
        grid=(B // bt, depth),
        in_specs=[
            act_spec(), act_spec(),                       # x, pos
            wspec(D, 3 * D),                              # fused qkv weight
            wspec(D, D),                                  # out projection
            wspec(D, H), wspec(H, D),                     # mlp fc1 / fc2
            wspec(6, D),                                  # ln1 g/b, bo, ln2 g/b, b2
            wspec(1, 3 * D),                              # fused qkv bias
            wspec(1, H),                                  # fc1 bias
            pl.BlockSpec((2, D), lambda b, l: (0, 0)),    # final norm g/b
        ],
        out_specs=act_spec(),
        compiler_params=pltpu.CompilerParams(
            dimension_semantics=("parallel", "arbitrary"),
            vmem_limit_bytes=vmem_limit),
        cost_estimate=pl.CostEstimate(flops=int(flops),
                                      transcendentals=int(transcendentals),
                                      bytes_accessed=int(bytes_accessed)),
    )(x, pos, wqkv, wo, w1, w2, vecs, bqkv, b1, norm)

    if return_token_num is not None:
        # LayerNorm is per-token, so norm-then-slice == slice-then-norm.
        out = out[:, -return_token_num:]
    return out


# ---------------------------------------------------------------------------
# Deterministic parameter init (mirrors TransformerDecoder._init_weights):
#   Linear: xavier_uniform weight, zero bias; LayerNorm: weight=1, bias=0.
# Weights are stacked along a leading depth axis so a single pallas_call can
# stream them with the layer grid axis.
# ---------------------------------------------------------------------------
def xavier_uniform(key, fan_in, fan_out):
    bound = math.sqrt(6.0 / (fan_in + fan_out))
    return jax.random.uniform(key, (fan_in, fan_out), jnp.float32, -bound, bound)


def init_params(key, embed_dim, depth, mlp_ratio):
    D, H = embed_dim, embed_dim * mlp_ratio
    wq, wk, wv, wo, w1, w2 = [], [], [], [], [], []
    for _ in range(depth):
        key, k1, k2, k3, k4, k5, k6 = jax.random.split(key, 7)
        wq.append(xavier_uniform(k1, D, D))
        wk.append(xavier_uniform(k2, D, D))
        wv.append(xavier_uniform(k3, D, D))
        wo.append(xavier_uniform(k4, D, D))
        w1.append(xavier_uniform(k5, D, H))
        w2.append(xavier_uniform(k6, H, D))
    zeros = lambda *s: jnp.zeros(s, jnp.float32)
    ones = lambda *s: jnp.ones(s, jnp.float32)
    return dict(
        ln1_g=ones(depth, 1, D), ln1_b=zeros(depth, 1, D),
        wq=jnp.stack(wq), wk=jnp.stack(wk), wv=jnp.stack(wv),
        bq=zeros(depth, 1, D), bk=zeros(depth, 1, D), bv=zeros(depth, 1, D),
        wo=jnp.stack(wo), bo=zeros(depth, 1, D),
        ln2_g=ones(depth, 1, D), ln2_b=zeros(depth, 1, D),
        w1=jnp.stack(w1), b1=zeros(depth, 1, H),
        w2=jnp.stack(w2), b2=zeros(depth, 1, D),
        norm_g=ones(1, D), norm_b=zeros(1, D),
    )


if __name__ == "__main__":
    # NOTE: real Point-MAE shapes (D multiple of 128, Bt*N multiple of 8) are
    # lane/sublane dense; these demo shapes are just a smoke test.
    B, N, D = 2, 8, 32          # batch, seq, embed_dim
    depth, num_heads, mlp_ratio = 2, 4, 4

    key = jax.random.PRNGKey(0)
    kp, kx, kpos = jax.random.split(key, 3)
    params = init_params(kp, D, depth, mlp_ratio)
    x = jax.random.normal(kx, (B, N, D), jnp.float32)
    pos = jax.random.normal(kpos, (B, N, D), jnp.float32)

    out = transformer_decoder_forward(x, pos, params, num_heads,
                                      return_token_num=None)
    jax.block_until_ready(out)
    assert out.shape == (B, N, D) and out.dtype == jnp.float32
    print("KERNEL_OK")
</pallas_src>

<mosaic_0001>
module attributes {stable_mosaic.version = 11 : i64} {
  func.func @decoder_kernel(%arg0: i32, %arg1: i32, %arg2: memref<1x8x32xf32, #tpu.memory_space<vmem>>, %arg3: memref<1x8x32xf32, #tpu.memory_space<vmem>>, %arg4: memref<1x32x96xbf16, #tpu.memory_space<vmem>>, %arg5: memref<1x32x32xbf16, #tpu.memory_space<vmem>>, %arg6: memref<1x32x128xbf16, #tpu.memory_space<vmem>>, %arg7: memref<1x128x32xbf16, #tpu.memory_space<vmem>>, %arg8: memref<1x6x32xf32, #tpu.memory_space<vmem>>, %arg9: memref<1x1x96xf32, #tpu.memory_space<vmem>>, %arg10: memref<1x1x128xf32, #tpu.memory_space<vmem>>, %arg11: memref<2x32xf32, #tpu.memory_space<vmem>>, %arg12: memref<1x8x32xf32, #tpu.memory_space<vmem>>) attributes {dimension_semantics = [#tpu.dimension_semantics<parallel>, #tpu.dimension_semantics<arbitrary>], iteration_bounds = array<i64: 2, 2>, scalar_prefetch = 0 : i64, scratch_operands = 0 : i64, tpu.core_type = #tpu.core_type<tc>, window_params = [{transform_indices = @transform_0, window_bounds = array<i64: 1, 8, 32>}, {transform_indices = @transform_1, window_bounds = array<i64: 1, 8, 32>}, {transform_indices = @transform_2, window_bounds = array<i64: 1, 32, 96>}, {transform_indices = @transform_3, window_bounds = array<i64: 1, 32, 32>}, {transform_indices = @transform_4, window_bounds = array<i64: 1, 32, 128>}, {transform_indices = @transform_5, window_bounds = array<i64: 1, 128, 32>}, {transform_indices = @transform_6, window_bounds = array<i64: 1, 6, 32>}, {transform_indices = @transform_7, window_bounds = array<i64: 1, 1, 96>}, {transform_indices = @transform_8, window_bounds = array<i64: 1, 1, 128>}, {pipeline_mode = #tpu.pipeline_mode<synchronous>, transform_indices = @transform_9, window_bounds = array<i64: 2, 32>}, {transform_indices = @transform_10, window_bounds = array<i64: 1, 8, 32>}]} {
    %c0_i32 = arith.constant 0 : i32
    %0 = arith.cmpi eq, %arg1, %c0_i32 : i32
    %1 = arith.extui %0 : i1 to i32
    %c0_i32_0 = arith.constant 0 : i32
    %2 = arith.cmpi ne, %1, %c0_i32_0 : i32
    scf.if %2 {
      %c0_61 = arith.constant 0 : index
      %c0_62 = arith.constant 0 : index
      %c0_63 = arith.constant 0 : index
      %175 = vector.load %arg2[%c0_61, %c0_62, %c0_63] : memref<1x8x32xf32, #tpu.memory_space<vmem>>, vector<1x8x32xf32>
      %c0_64 = arith.constant 0 : index
      %c0_65 = arith.constant 0 : index
      %c0_66 = arith.constant 0 : index
      %176 = vector.load %arg12[%c0_64, %c0_65, %c0_66] : memref<1x8x32xf32, #tpu.memory_space<vmem>>, vector<1x8x32xf32>
      tpu.vector_store %arg12[%c0_64, %c0_65, %c0_66], %175 {strides = array<i32>} : memref<1x8x32xf32, #tpu.memory_space<vmem>>, vector<1x8x32xf32>,
    } else {
    }
    %c0 = arith.constant 0 : index
    %c0_1 = arith.constant 0 : index
    %c0_2 = arith.constant 0 : index
    %3 = vector.load %arg8[%c0, %c0_1, %c0_2] : memref<1x6x32xf32, #tpu.memory_space<vmem>>, vector<1x1x32xf32>
    %4 = vector.shape_cast %3 : vector<1x1x32xf32> to vector<1x32xf32>
    %c0_3 = arith.constant 0 : index
    %c1 = arith.constant 1 : index
    %c0_4 = arith.constant 0 : index
    %5 = vector.load %arg8[%c0_3, %c1, %c0_4] : memref<1x6x32xf32, #tpu.memory_space<vmem>>, vector<1x1x32xf32>
    %6 = vector.shape_cast %5 : vector<1x1x32xf32> to vector<1x32xf32>
    %c0_5 = arith.constant 0 : index
    %c2 = arith.constant 2 : index
    %c0_6 = arith.constant 0 : index
    %7 = vector.load %arg8[%c0_5, %c2, %c0_6] : memref<1x6x32xf32, #tpu.memory_space<vmem>>, vector<1x1x32xf32>
    %8 = vector.shape_cast %7 : vector<1x1x32xf32> to vector<1x32xf32>
    %c0_7 = arith.constant 0 : index
    %c3 = arith.constant 3 : index
    %c0_8 = arith.constant 0 : index
    %9 = vector.load %arg8[%c0_7, %c3, %c0_8] : memref<1x6x32xf32, #tpu.memory_space<vmem>>, vector<1x1x32xf32>
    %10 = vector.shape_cast %9 : vector<1x1x32xf32> to vector<1x32xf32>
    %c0_9 = arith.constant 0 : index
    %c4 = arith.constant 4 : index
    %c0_10 = arith.constant 0 : index
    %11 = vector.load %arg8[%c0_9, %c4, %c0_10] : memref<1x6x32xf32, #tpu.memory_space<vmem>>, vector<1x1x32xf32>
    %12 = vector.shape_cast %11 : vector<1x1x32xf32> to vector<1x32xf32>
    %c0_11 = arith.constant 0 : index
    %c5 = arith.constant 5 : index
    %c0_12 = arith.constant 0 : index
    %13 = vector.load %arg8[%c0_11, %c5, %c0_12] : memref<1x6x32xf32, #tpu.memory_space<vmem>>, vector<1x1x32xf32>
    %14 = vector.shape_cast %13 : vector<1x1x32xf32> to vector<1x32xf32>
    %c0_13 = arith.constant 0 : index
    %c0_14 = arith.constant 0 : index
    %c0_15 = arith.constant 0 : index
    %15 = vector.load %arg12[%c0_13, %c0_14, %c0_15] : memref<1x8x32xf32, #tpu.memory_space<vmem>>, vector<1x8x32xf32>
    %c0_16 = arith.constant 0 : index
    %c0_17 = arith.constant 0 : index
    %c0_18 = arith.constant 0 : index
    %16 = vector.load %arg3[%c0_16, %c0_17, %c0_18] : memref<1x8x32xf32, #tpu.memory_space<vmem>>, vector<1x8x32xf32>
    %17 = arith.addf %15, %16 : vector<1x8x32xf32>
    %18 = vector.shape_cast %17 : vector<1x8x32xf32> to vector<8x32xf32>
    %cst = arith.constant dense<0.000000e+00> : vector<8xf32>
    %19 = vector.multi_reduction <add>, %18, %cst [1] : vector<8x32xf32> to vector<8xf32>
    %20 = vector.shape_cast %19 : vector<8xf32> to vector<8x1xf32>
    %cst_19 = arith.constant 3.200000e+01 : f32
    %21 = vector.broadcast %cst_19 : f32 to vector<8x1xf32>
    %22 = arith.divf %20, %21 : vector<8x1xf32>
    %23 = vector.broadcast %22 : vector<8x1xf32> to vector<8x32xf32>
    %24 = arith.subf %18, %23 : vector<8x32xf32>
    %25 = arith.mulf %24, %24 : vector<8x32xf32>
    %cst_20 = arith.constant dense<0.000000e+00> : vector<8xf32>
    %26 = vector.multi_reduction <add>, %25, %cst_20 [1] : vector<8x32xf32> to vector<8xf32>
    %27 = vector.shape_cast %26 : vector<8xf32> to vector<8x1xf32>
    %cst_21 = arith.constant 3.200000e+01 : f32
    %28 = vector.broadcast %cst_21 : f32 to vector<8x1xf32>
    %29 = arith.divf %27, %28 : vector<8x1xf32>
    %30 = vector.broadcast %22 : vector<8x1xf32> to vector<8x32xf32>
    %31 = arith.subf %18, %30 : vector<8x32xf32>
    %cst_22 = arith.constant 9.99999974E-6 : f32
    %32 = vector.broadcast %cst_22 : f32 to vector<8x1xf32>
    %33 = arith.addf %29, %32 : vector<8x1xf32>
    %34 = math.rsqrt %33 : vector<8x1xf32>
    %35 = vector.broadcast %34 : vector<8x1xf32> to vector<8x32xf32>
    %36 = arith.mulf %31, %35 : vector<8x32xf32>
    %37 = vector.broadcast %4 : vector<1x32xf32> to vector<8x32xf32>
    %38 = arith.mulf %36, %37 : vector<8x32xf32>
    %39 = vector.broadcast %6 : vector<1x32xf32> to vector<8x32xf32>
    %40 = arith.addf %38, %39 : vector<8x32xf32>
    %41 = arith.truncf %40 : vector<8x32xf32> to vector<8x32xbf16>
    %c0_23 = arith.constant 0 : index
    %c0_24 = arith.constant 0 : index
    %c0_25 = arith.constant 0 : index
    %42 = vector.load %arg4[%c0_23, %c0_24, %c0_25] : memref<1x32x96xbf16, #tpu.memory_space<vmem>>, vector<1x32x96xbf16>
    %43 = vector.shape_cast %42 : vector<1x32x96xbf16> to vector<32x96xbf16>
    %cst_26 = arith.constant dense<0.000000e+00> : vector<8x96xf32>
    %44 = tpu.matmul %41, %43, %cst_26 {dimension_numbers = #tpu.dot_dimension_numbers<[1], [0], [0], [1], [0, 0, 1, 1], [], []>} : vector<8x32xbf16>, vector<32x96xbf16>, vector<8x96xf32> -> vector<8x96xf32>
    %c0_27 = arith.constant 0 : index
    %c0_28 = arith.constant 0 : index
    %c0_29 = arith.constant 0 : index
    %45 = vector.load %arg9[%c0_27, %c0_28, %c0_29] : memref<1x1x96xf32, #tpu.memory_space<vmem>>, vector<1x1x96xf32>
    %46 = vector.shape_cast %45 : vector<1x1x96xf32> to vector<1x96xf32>
    %47 = vector.broadcast %46 : vector<1x96xf32> to vector<8x96xf32>
    %48 = arith.addf %44, %47 : vector<8x96xf32>
    %49 = vector.extract_strided_slice %48 {offsets = [0, 0], sizes = [8, 32], strides = [1, 1]} : vector<8x96xf32> to vector<8x32xf32>
    %50 = vector.extract_strided_slice %48 {offsets = [0, 32], sizes = [8, 32], strides = [1, 1]} : vector<8x96xf32> to vector<8x32xf32>
    %51 = vector.extract_strided_slice %48 {offsets = [0, 64], sizes = [8, 32], strides = [1, 1]} : vector<8x96xf32> to vector<8x32xf32>
    %52 = arith.truncf %49 : vector<8x32xf32> to vector<8x32xbf16>
    %53 = vector.shape_cast %52 : vector<8x32xbf16> to vector<1x8x32xbf16>
    %54 = vector.extract_strided_slice %53 {offsets = [0, 0, 0], sizes = [1, 8, 8], strides = [1, 1, 1]} : vector<1x8x32xbf16> to vector<1x8x8xbf16>
    %55 = vector.extract_strided_slice %53 {offsets = [0, 0, 8], sizes = [1, 8, 8], strides = [1, 1, 1]} : vector<1x8x32xbf16> to vector<1x8x8xbf16>
    %56 = vector.extract_strided_slice %53 {offsets = [0, 0, 16], sizes = [1, 8, 8], strides = [1, 1, 1]} : vector<1x8x32xbf16> to vector<1x8x8xbf16>
    %57 = vector.extract_strided_slice %53 {offsets = [0, 0, 24], sizes = [1, 8, 8], strides = [1, 1, 1]} : vector<1x8x32xbf16> to vector<1x8x8xbf16>
    %58 = vector.shape_cast %54 : vector<1x8x8xbf16> to vector<1x1x8x8xbf16>
    %59 = vector.shape_cast %55 : vector<1x8x8xbf16> to vector<1x1x8x8xbf16>
    %60 = vector.shape_cast %56 : vector<1x8x8xbf16> to vector<1x1x8x8xbf16>
    %61 = vector.shape_cast %57 : vector<1x8x8xbf16> to vector<1x1x8x8xbf16>
    %62 = tpu.concatenate %58, %59, %60, %61 in 0 : vector<1x1x8x8xbf16>, vector<1x1x8x8xbf16>, vector<1x1x8x8xbf16>, vector<1x1x8x8xbf16> -> vector<4x1x8x8xbf16>
    %63 = vector.shape_cast %62 : vector<4x1x8x8xbf16> to vector<4x8x8xbf16>
    %64 = arith.truncf %50 : vector<8x32xf32> to vector<8x32xbf16>
    %65 = vector.shape_cast %64 : vector<8x32xbf16> to vector<1x8x32xbf16>
    %66 = vector.extract_strided_slice %65 {offsets = [0, 0, 0], sizes = [1, 8, 8], strides = [1, 1, 1]} : vector<1x8x32xbf16> to vector<1x8x8xbf16>
    %67 = vector.extract_strided_slice %65 {offsets = [0, 0, 8], sizes = [1, 8, 8], strides = [1, 1, 1]} : vector<1x8x32xbf16> to vector<1x8x8xbf16>
    %68 = vector.extract_strided_slice %65 {offsets = [0, 0, 16], sizes = [1, 8, 8], strides = [1, 1, 1]} : vector<1x8x32xbf16> to vector<1x8x8xbf16>
    %69 = vector.extract_strided_slice %65 {offsets = [0, 0, 24], sizes = [1, 8, 8], strides = [1, 1, 1]} : vector<1x8x32xbf16> to vector<1x8x8xbf16>
    %70 = vector.shape_cast %66 : vector<1x8x8xbf16> to vector<1x1x8x8xbf16>
    %71 = vector.shape_cast %67 : vector<1x8x8xbf16> to vector<1x1x8x8xbf16>
    %72 = vector.shape_cast %68 : vector<1x8x8xbf16> to vector<1x1x8x8xbf16>
    %73 = vector.shape_cast %69 : vector<1x8x8xbf16> to vector<1x1x8x8xbf16>
    %74 = tpu.concatenate %70, %71, %72, %73 in 0 : vector<1x1x8x8xbf16>, vector<1x1x8x8xbf16>, vector<1x1x8x8xbf16>, vector<1x1x8x8xbf16> -> vector<4x1x8x8xbf16>
    %75 = vector.shape_cast %74 : vector<4x1x8x8xbf16> to vector<4x8x8xbf16>
    %76 = arith.truncf %51 : vector<8x32xf32> to vector<8x32xbf16>
    %77 = vector.shape_cast %76 : vector<8x32xbf16> to vector<1x8x32xbf16>
    %78 = vector.extract_strided_slice %77 {offsets = [0, 0, 0], sizes = [1, 8, 8], strides = [1, 1, 1]} : vector<1x8x32xbf16> to vector<1x8x8xbf16>
    %79 = vector.extract_strided_slice %77 {offsets = [0, 0, 8], sizes = [1, 8, 8], strides = [1, 1, 1]} : vector<1x8x32xbf16> to vector<1x8x8xbf16>
    %80 = vector.extract_strided_slice %77 {offsets = [0, 0, 16], sizes = [1, 8, 8], strides = [1, 1, 1]} : vector<1x8x32xbf16> to vector<1x8x8xbf16>
    %81 = vector.extract_strided_slice %77 {offsets = [0, 0, 24], sizes = [1, 8, 8], strides = [1, 1, 1]} : vector<1x8x32xbf16> to vector<1x8x8xbf16>
    %82 = vector.shape_cast %78 : vector<1x8x8xbf16> to vector<1x1x8x8xbf16>
    %83 = vector.shape_cast %79 : vector<1x8x8xbf16> to vector<1x1x8x8xbf16>
    %84 = vector.shape_cast %80 : vector<1x8x8xbf16> to vector<1x1x8x8xbf16>
    %85 = vector.shape_cast %81 : vector<1x8x8xbf16> to vector<1x1x8x8xbf16>
    %86 = tpu.concatenate %82, %83, %84, %85 in 0 : vector<1x1x8x8xbf16>, vector<1x1x8x8xbf16>, vector<1x1x8x8xbf16>, vector<1x1x8x8xbf16> -> vector<4x1x8x8xbf16>
    %87 = vector.shape_cast %86 : vector<4x1x8x8xbf16> to vector<4x8x8xbf16>
    "tpu.trace_start"() <{level = 10 : i32, message = "gqd,gkd->gqk"}> : () -> ()
    %cst_30 = arith.constant dense<0.000000e+00> : vector<4x8x8xf32>
    %88 = tpu.matmul %63, %75, %cst_30 {dimension_numbers = #tpu.dot_dimension_numbers<[2], [2], [1], [1], [0, 0, 0, 1, 1, 1], [0], [0]>} : vector<4x8x8xbf16>, vector<4x8x8xbf16>, vector<4x8x8xf32> -> vector<4x8x8xf32>
    "tpu.trace_stop"() : () -> ()
    %cst_31 = arith.constant dense<0xFF800000> : vector<4x8xf32>
    %89 = vector.multi_reduction <maximumf>, %88, %cst_31 [2] : vector<4x8x8xf32> to vector<4x8xf32>
    %90 = vector.shape_cast %89 : vector<4x8xf32> to vector<4x8x1xf32>
    %91 = vector.broadcast %90 : vector<4x8x1xf32> to vector<4x8x8xf32>
    %92 = arith.subf %88, %91 : vector<4x8x8xf32>
    %93 = math.exp %92 : vector<4x8x8xf32>
    %cst_32 = arith.constant dense<0.000000e+00> : vector<4x8xf32>
    %94 = vector.multi_reduction <add>, %93, %cst_32 [2] : vector<4x8x8xf32> to vector<4x8xf32>
    %95 = vector.shape_cast %94 : vector<4x8xf32> to vector<4x8x1xf32>
    %96 = tpu.reciprocal %95 {approx = true} : vector<4x8x1xf32> -> vector<4x8x1xf32>
    %97 = vector.broadcast %96 : vector<4x8x1xf32> to vector<4x8x8xf32>
    %98 = arith.mulf %93, %97 : vector<4x8x8xf32>
    %99 = arith.truncf %98 : vector<4x8x8xf32> to vector<4x8x8xbf16>
    "tpu.trace_start"() <{level = 10 : i32, message = "gqk,gkd->gqd"}> : () -> ()
    %cst_33 = arith.constant dense<0.000000e+00> : vector<4x8x8xf32>
    %100 = tpu.matmul %99, %87, %cst_33 {dimension_numbers = #tpu.dot_dimension_numbers<[2], [1], [1], [2], [0, 0, 0, 1, 1, 2], [0], [0]>} : vector<4x8x8xbf16>, vector<4x8x8xbf16>, vector<4x8x8xf32> -> vector<4x8x8xf32>
    "tpu.trace_stop"() : () -> ()
    %101 = arith.truncf %100 : vector<4x8x8xf32> to vector<4x8x8xbf16>
    %102 = vector.shape_cast %101 : vector<4x8x8xbf16> to vector<4x1x8x8xbf16>
    %103 = vector.extract_strided_slice %102 {offsets = [0, 0, 0, 0], sizes = [1, 1, 8, 8], strides = [1, 1, 1, 1]} : vector<4x1x8x8xbf16> to vector<1x1x8x8xbf16>
    %104 = vector.shape_cast %103 : vector<1x1x8x8xbf16> to vector<1x8x8xbf16>
    %105 = vector.extract_strided_slice %102 {offsets = [1, 0, 0, 0], sizes = [1, 1, 8, 8], strides = [1, 1, 1, 1]} : vector<4x1x8x8xbf16> to vector<1x1x8x8xbf16>
    %106 = vector.shape_cast %105 : vector<1x1x8x8xbf16> to vector<1x8x8xbf16>
    %107 = vector.extract_strided_slice %102 {offsets = [2, 0, 0, 0], sizes = [1, 1, 8, 8], strides = [1, 1, 1, 1]} : vector<4x1x8x8xbf16> to vector<1x1x8x8xbf16>
    %108 = vector.shape_cast %107 : vector<1x1x8x8xbf16> to vector<1x8x8xbf16>
    %109 = vector.extract_strided_slice %102 {offsets = [3, 0, 0, 0], sizes = [1, 1, 8, 8], strides = [1, 1, 1, 1]} : vector<4x1x8x8xbf16> to vector<1x1x8x8xbf16>
    %110 = vector.shape_cast %109 : vector<1x1x8x8xbf16> to vector<1x8x8xbf16>
    %111 = tpu.concatenate %104, %106, %108, %110 in 2 : vector<1x8x8xbf16>, vector<1x8x8xbf16>, vector<1x8x8xbf16>, vector<1x8x8xbf16> -> vector<1x8x32xbf16>
    %112 = vector.shape_cast %111 : vector<1x8x32xbf16> to vector<8x32xbf16>
    %c0_34 = arith.constant 0 : index
    %c0_35 = arith.constant 0 : index
    %c0_36 = arith.constant 0 : index
    %113 = vector.load %arg5[%c0_34, %c0_35, %c0_36] : memref<1x32x32xbf16, #tpu.memory_space<vmem>>, vector<1x32x32xbf16>
    %114 = vector.shape_cast %113 : vector<1x32x32xbf16> to vector<32x32xbf16>
    %cst_37 = arith.constant dense<0.000000e+00> : vector<8x32xf32>
    %115 = tpu.matmul %112, %114, %cst_37 {dimension_numbers = #tpu.dot_dimension_numbers<[1], [0], [0], [1], [0, 0, 1, 1], [], []>} : vector<8x32xbf16>, vector<32x32xbf16>, vector<8x32xf32> -> vector<8x32xf32>
    %116 = vector.broadcast %8 : vector<1x32xf32> to vector<8x32xf32>
    %117 = arith.addf %115, %116 : vector<8x32xf32>
    %118 = arith.addf %18, %117 : vector<8x32xf32>
    %cst_38 = arith.constant dense<0.000000e+00> : vector<8xf32>
    %119 = vector.multi_reduction <add>, %118, %cst_38 [1] : vector<8x32xf32> to vector<8xf32>
    %120 = vector.shape_cast %119 : vector<8xf32> to vector<8x1xf32>
    %cst_39 = arith.constant 3.200000e+01 : f32
    %121 = vector.broadcast %cst_39 : f32 to vector<8x1xf32>
    %122 = arith.divf %120, %121 : vector<8x1xf32>
    %123 = vector.broadcast %122 : vector<8x1xf32> to vector<8x32xf32>
    %124 = arith.subf %118, %123 : vector<8x32xf32>
    %125 = arith.mulf %124, %124 : vector<8x32xf32>
    %cst_40 = arith.constant dense<0.000000e+00> : vector<8xf32>
    %126 = vector.multi_reduction <add>, %125, %cst_40 [1] : vector<8x32xf32> to vector<8xf32>
    %127 = vector.shape_cast %126 : vector<8xf32> to vector<8x1xf32>
    %cst_41 = arith.constant 3.200000e+01 : f32
    %128 = vector.broadcast %cst_41 : f32 to vector<8x1xf32>
    %129 = arith.divf %127, %128 : vector<8x1xf32>
    %130 = vector.broadcast %122 : vector<8x1xf32> to vector<8x32xf32>
    %131 = arith.subf %118, %130 : vector<8x32xf32>
    %cst_42 = arith.constant 9.99999974E-6 : f32
    %132 = vector.broadcast %cst_42 : f32 to vector<8x1xf32>
    %133 = arith.addf %129, %132 : vector<8x1xf32>
    %134 = math.rsqrt %133 : vector<8x1xf32>
    %135 = vector.broadcast %134 : vector<8x1xf32> to vector<8x32xf32>
    %136 = arith.mulf %131, %135 : vector<8x32xf32>
    %137 = vector.broadcast %10 : vector<1x32xf32> to vector<8x32xf32>
    %138 = arith.mulf %136, %137 : vector<8x32xf32>
    %139 = vector.broadcast %12 : vector<1x32xf32> to vector<8x32xf32>
    %140 = arith.addf %138, %139 : vector<8x32xf32>
    %141 = arith.truncf %140 : vector<8x32xf32> to vector<8x32xbf16>
    %c0_43 = arith.constant 0 : index
    %c0_44 = arith.constant 0 : index
    %c0_45 = arith.constant 0 : index
    %142 = vector.load %arg6[%c0_43, %c0_44, %c0_45] : memref<1x32x128xbf16, #tpu.memory_space<vmem>>, vector<1x32x128xbf16>
    %143 = vector.shape_cast %142 : vector<1x32x128xbf16> to vector<32x128xbf16>
    %cst_46 = arith.constant dense<0.000000e+00> : vector<8x128xf32>
    %144 = tpu.matmul %141, %143, %cst_46 {dimension_numbers = #tpu.dot_dimension_numbers<[1], [0], [0], [1], [0, 0, 1, 1], [], []>} : vector<8x32xbf16>, vector<32x128xbf16>, vector<8x128xf32> -> vector<8x128xf32>
    %c0_47 = arith.constant 0 : index
    %c0_48 = arith.constant 0 : index
    %c0_49 = arith.constant 0 : index
    %145 = vector.load %arg10[%c0_47, %c0_48, %c0_49] : memref<1x1x128xf32, #tpu.memory_space<vmem>>, vector<1x1x128xf32>
    %146 = vector.shape_cast %145 : vector<1x1x128xf32> to vector<1x128xf32>
    %147 = vector.broadcast %146 : vector<1x128xf32> to vector<8x128xf32>
    %148 = arith.addf %144, %147 : vector<8x128xf32>
    %149 = arith.mulf %148, %148 : vector<8x128xf32>
    %150 = arith.mulf %148, %149 : vector<8x128xf32>
    %cst_50 = arith.constant 4.471500e-02 : f32
    %151 = vector.broadcast %cst_50 : f32 to vector<8x128xf32>
    %152 = arith.mulf %151, %150 : vector<8x128xf32>
    %153 = arith.addf %148, %152 : vector<8x128xf32>
    %cst_51 = arith.constant 0.797884583 : f32
    %154 = vector.broadcast %cst_51 : f32 to vector<8x128xf32>
    %155 = arith.mulf %154, %153 : vector<8x128xf32>
    %156 = math.tanh %155 : vector<8x128xf32>
    %cst_52 = arith.constant 1.000000e+00 : f32
    %157 = vector.broadcast %cst_52 : f32 to vector<8x128xf32>
    %158 = arith.addf %157, %156 : vector<8x128xf32>
    %cst_53 = arith.constant 5.000000e-01 : f32
    %159 = vector.broadcast %cst_53 : f32 to vector<8x128xf32>
    %160 = arith.mulf %159, %158 : vector<8x128xf32>
    %161 = arith.mulf %148, %160 : vector<8x128xf32>
    %162 = arith.truncf %161 : vector<8x128xf32> to vector<8x128xbf16>
    %c0_54 = arith.constant 0 : index
    %c0_55 = arith.constant 0 : index
    %c0_56 = arith.constant 0 : index
    %163 = vector.load %arg7[%c0_54, %c0_55, %c0_56] : memref<1x128x32xbf16, #tpu.memory_space<vmem>>, vector<1x128x32xbf16>
    %164 = vector.shape_cast %163 : vector<1x128x32xbf16> to vector<128x32xbf16>
    %cst_57 = arith.constant dense<0.000000e+00> : vector<8x32xf32>
    %165 = tpu.matmul %162, %164, %cst_57 {dimension_numbers = #tpu.dot_dimension_numbers<[1], [0], [0], [1], [0, 0, 1, 1], [], []>} : vector<8x128xbf16>, vector<128x32xbf16>, vector<8x32xf32> -> vector<8x32xf32>
    %166 = vector.broadcast %14 : vector<1x32xf32> to vector<8x32xf32>
    %167 = arith.addf %165, %166 : vector<8x32xf32>
    %168 = arith.addf %118, %167 : vector<8x32xf32>
    %c1_i32 = arith.constant 1 : i32
    %169 = arith.cmpi slt, %arg1, %c1_i32 : i32
    %170 = arith.extui %169 : i1 to i32
    %c0_i32_58 = arith.constant 0 : i32
    %171 = arith.cmpi ne, %170, %c0_i32_58 : i32
    scf.if %171 {
      %175 = vector.shape_cast %168 : vector<8x32xf32> to vector<1x8x32xf32>
      %c0_61 = arith.constant 0 : index
      %c0_62 = arith.constant 0 : index
      %c0_63 = arith.constant 0 : index
      %176 = vector.load %arg12[%c0_61, %c0_62, %c0_63] : memref<1x8x32xf32, #tpu.memory_space<vmem>>, vector<1x8x32xf32>
      tpu.vector_store %arg12[%c0_61, %c0_62, %c0_63], %175 {strides = array<i32>} : memref<1x8x32xf32, #tpu.memory_space<vmem>>, vector<1x8x32xf32>,
    } else {
    }
    %c1_i32_59 = arith.constant 1 : i32
    %172 = arith.cmpi eq, %arg1, %c1_i32_59 : i32
    %173 = arith.extui %172 : i1 to i32
    %c0_i32_60 = arith.constant 0 : i32
    %174 = arith.cmpi ne, %173, %c0_i32_60 : i32
    scf.if %174 {
      %c0_61 = arith.constant 0 : index
      %c0_62 = arith.constant 0 : index
      %175 = vector.load %arg11[%c0_61, %c0_62] : memref<2x32xf32, #tpu.memory_space<vmem>>, vector<1x32xf32>
      %c1_63 = arith.constant 1 : index
      %c0_64 = arith.constant 0 : index
      %176 = vector.load %arg11[%c1_63, %c0_64] : memref<2x32xf32, #tpu.memory_space<vmem>>, vector<1x32xf32>
      %cst_65 = arith.constant dense<0.000000e+00> : vector<8xf32>
      %177 = vector.multi_reduction <add>, %168, %cst_65 [1] : vector<8x32xf32> to vector<8xf32>
      %178 = vector.shape_cast %177 : vector<8xf32> to vector<8x1xf32>
      %cst_66 = arith.constant 3.200000e+01 : f32
      %179 = vector.broadcast %cst_66 : f32 to vector<8x1xf32>
      %180 = arith.divf %178, %179 : vector<8x1xf32>
      %181 = vector.broadcast %180 : vector<8x1xf32> to vector<8x32xf32>
      %182 = arith.subf %168, %181 : vector<8x32xf32>
      %183 = arith.mulf %182, %182 : vector<8x32xf32>
      %cst_67 = arith.constant dense<0.000000e+00> : vector<8xf32>
      %184 = vector.multi_reduction <add>, %183, %cst_67 [1] : vector<8x32xf32> to vector<8xf32>
      %185 = vector.shape_cast %184 : vector<8xf32> to vector<8x1xf32>
      %cst_68 = arith.constant 3.200000e+01 : f32
      %186 = vector.broadcast %cst_68 : f32 to vector<8x1xf32>
      %187 = arith.divf %185, %186 : vector<8x1xf32>
      %188 = vector.broadcast %180 : vector<8x1xf32> to vector<8x32xf32>
      %189 = arith.subf %168, %188 : vector<8x32xf32>
      %cst_69 = arith.constant 9.99999974E-6 : f32
      %190 = vector.broadcast %cst_69 : f32 to vector<8x1xf32>
      %191 = arith.addf %187, %190 : vector<8x1xf32>
      %192 = math.rsqrt %191 : vector<8x1xf32>
      %193 = vector.broadcast %192 : vector<8x1xf32> to vector<8x32xf32>
      %194 = arith.mulf %189, %193 : vector<8x32xf32>
      %195 = vector.broadcast %175 : vector<1x32xf32> to vector<8x32xf32>
      %196 = arith.mulf %194, %195 : vector<8x32xf32>
      %197 = vector.broadcast %176 : vector<1x32xf32> to vector<8x32xf32>
      %198 = arith.addf %196, %197 : vector<8x32xf32>
      %199 = vector.shape_cast %198 : vector<8x32xf32> to vector<1x8x32xf32>
      %c0_70 = arith.constant 0 : index
      %c0_71 = arith.constant 0 : index
      %c0_72 = arith.constant 0 : index
      %200 = vector.load %arg12[%c0_70, %c0_71, %c0_72] : memref<1x8x32xf32, #tpu.memory_space<vmem>>, vector<1x8x32xf32>
      tpu.vector_store %arg12[%c0_70, %c0_71, %c0_72], %199 {strides = array<i32>} : memref<1x8x32xf32, #tpu.memory_space<vmem>>, vector<1x8x32xf32>,
    } else {
    }
    return
  }
  func.func @transform_0(%arg0: i32, %arg1: i32) -> (i32, i32, i32) {
    %c0_i32 = arith.constant 0 : i32
    %c0_i32_0 = arith.constant 0 : i32
    %c0_i32_1 = arith.constant 0 : i32
    return %arg0, %c0_i32, %c0_i32_0 : i32, i32, i32
  }
  func.func @transform_1(%arg0: i32, %arg1: i32) -> (i32, i32, i32) {
    %c0_i32 = arith.constant 0 : i32
    %c0_i32_0 = arith.constant 0 : i32
    %c0_i32_1 = arith.constant 0 : i32
    return %arg0, %c0_i32, %c0_i32_0 : i32, i32, i32
  }
  func.func @transform_2(%arg0: i32, %arg1: i32) -> (i32, i32, i32) {
    %c0_i32 = arith.constant 0 : i32
    %c0_i32_0 = arith.constant 0 : i32
    %c0_i32_1 = arith.constant 0 : i32
    return %arg1, %c0_i32, %c0_i32_0 : i32, i32, i32
  }
  func.func @transform_3(%arg0: i32, %arg1: i32) -> (i32, i32, i32) {
    %c0_i32 = arith.constant 0 : i32
    %c0_i32_0 = arith.constant 0 : i32
    %c0_i32_1 = arith.constant 0 : i32
    return %arg1, %c0_i32, %c0_i32_0 : i32, i32, i32
  }
  func.func @transform_4(%arg0: i32, %arg1: i32) -> (i32, i32, i32) {
    %c0_i32 = arith.constant 0 : i32
    %c0_i32_0 = arith.constant 0 : i32
    %c0_i32_1 = arith.constant 0 : i32
    return %arg1, %c0_i32, %c0_i32_0 : i32, i32, i32
  }
  func.func @transform_5(%arg0: i32, %arg1: i32) -> (i32, i32, i32) {
    %c0_i32 = arith.constant 0 : i32
    %c0_i32_0 = arith.constant 0 : i32
    %c0_i32_1 = arith.constant 0 : i32
    return %arg1, %c0_i32, %c0_i32_0 : i32, i32, i32
  }
  func.func @transform_6(%arg0: i32, %arg1: i32) -> (i32, i32, i32) {
    %c0_i32 = arith.constant 0 : i32
    %c0_i32_0 = arith.constant 0 : i32
    %c0_i32_1 = arith.constant 0 : i32
    return %arg1, %c0_i32, %c0_i32_0 : i32, i32, i32
  }
  func.func @transform_7(%arg0: i32, %arg1: i32) -> (i32, i32, i32) {
    %c0_i32 = arith.constant 0 : i32
    %c0_i32_0 = arith.constant 0 : i32
    %c0_i32_1 = arith.constant 0 : i32
    return %arg1, %c0_i32, %c0_i32_0 : i32, i32, i32
  }
  func.func @transform_8(%arg0: i32, %arg1: i32) -> (i32, i32, i32) {
    %c0_i32 = arith.constant 0 : i32
    %c0_i32_0 = arith.constant 0 : i32
    %c0_i32_1 = arith.constant 0 : i32
    return %arg1, %c0_i32, %c0_i32_0 : i32, i32, i32
  }
  func.func @transform_9(%arg0: i32, %arg1: i32) -> (i32, i32) {
    %c0_i32 = arith.constant 0 : i32
    %c0_i32_0 = arith.constant 0 : i32
    %c0_i32_1 = arith.constant 0 : i32
    return %c0_i32, %c0_i32_0 : i32, i32
  }
  func.func @transform_10(%arg0: i32, %arg1: i32) -> (i32, i32, i32) {
    %c0_i32 = arith.constant 0 : i32
    %c0_i32_0 = arith.constant 0 : i32
    %c0_i32_1 = arith.constant 0 : i32
    return %arg0, %c0_i32, %c0_i32_0 : i32, i32, i32
  }
}

</mosaic_0001>

<llo_original>
// kernel: tpu_custom_call.1
$region0: #{tpu_custom_call.1}
  #allocation0 [shape = 'u32[]', space=smem, size = 0x4, offset = 0x4, fixed_abs, tag = 'smem constant byte address 0x4 - core index']
  #allocation1 [shape = 'u32[144,128]{1,0:T(1,128)}', space=vmem, size = 0x12000, scoped, tag = 'internal scratch']
  %s0 = inlined_call_operand.vmem [shape: f32[2,8,32], index: 0, kind: input, shape index: {}]
  %s1 = inlined_call_operand.vmem [shape: f32[2,8,32], index: 1, kind: input, shape index: {}]
  %s2 = inlined_call_operand.vmem [shape: bf16[2,32,96], index: 2, kind: input, shape index: {}]
  %s3 = inlined_call_operand.vmem [shape: bf16[2,32,32], index: 3, kind: input, shape index: {}]
  %s4 = inlined_call_operand.vmem [shape: bf16[2,32,128], index: 4, kind: input, shape index: {}]
  %s5 = inlined_call_operand.vmem [shape: bf16[2,128,32], index: 5, kind: input, shape index: {}]
  %s6 = inlined_call_operand.vmem [shape: f32[2,6,32], index: 6, kind: input, shape index: {}]
  %s7 = inlined_call_operand.vmem [shape: f32[2,1,96], index: 7, kind: input, shape index: {}]
  %s8 = inlined_call_operand.vmem [shape: f32[2,1,128], index: 8, kind: input, shape index: {}]
  %s9 = inlined_call_operand.vmem [shape: f32[2,32], index: 9, kind: input, shape index: {}]
  %s10 = inlined_call_operand.hbm [shape: f32[2,8,32], index: 10, kind: output, shape index: {}]
  %s11 = sld [smem:[#allocation0]]
  $region85: #{tpu_custom_call.1} parent=0
    _
  %s13 = ssub.s32 1, %s11
  %s14 = scalar_select 0, %s13, %s11
  $region1: #{tpu_custom_call.1} parent=0
    #allocation2 [shape = 'u8[8192]{0}', space=vmem, size = 0x2000, scoped, tag = 'output window, operand 0']
    #allocation3 [shape = 's32[2]{0}', space=sflag, size = 0x8, scoped, tag = 'scoped memory for tpu_custom_call.1']
    %15 = vsyncpa [#allocation3], 0
    %s16 = scalar_lea.sflag [#allocation3], 1
    %17 = vsyncpa %s16, 0
    loop: start=0, step=1, limit=6
    $region2: #{tpu_custom_call.1} parent=1 // loop_pre_header
      _
    $region3: #{tpu_custom_call.1} parent=1 // loop_header
      %s19 = sphi 0, %s23
      %p20 = scmp.ge.s32.totalorder %s19, 6
      %s26 = sphi 0, %s38
      %s27 = sphi 0, %s34
      %s28 = sphi 0, %s26
      %s29 = sphi 0, %s27
      %s30 = sphi 0, %s28
      %s31 = sphi 0, %s29
      %s41 = sphi 0, %s43
      %s44 = sphi 0, %s41
      %s45 = sphi 0, %s44
      %s61 = sphi 0, %s45
      %s67 = sphi 0, %s69
      %s70 = sphi 0, %s67
      %s71 = sphi 0, %s70
      %s87 = sphi 0, %s71
      %s93 = sphi 0, %s95
      %s96 = sphi 0, %s93
      %s97 = sphi 0, %s96
      %s113 = sphi 0, %s97
      %s119 = sphi 0, %s121
      %s122 = sphi 0, %s119
      %s123 = sphi 0, %s122
      %s139 = sphi 0, %s123
      %s145 = sphi 0, %s147
      %s148 = sphi 0, %s145
      %s149 = sphi 0, %s148
      %s165 = sphi 0, %s149
      %s171 = sphi 0, %s173
      %s174 = sphi 0, %s171
      %s175 = sphi 0, %s174
      %s191 = sphi 0, %s175
      %s197 = sphi 0, %s199
      %s200 = sphi 0, %s197
      %s201 = sphi 0, %s200
      %s217 = sphi 0, %s201
      %s223 = sphi 0, %s225
      %s226 = sphi 0, %s223
      %s227 = sphi 0, %s226
      %s243 = sphi 0, %s227
      %s249 = sphi 0, %s251
      %s252 = sphi 0, %s249
      %s253 = sphi 0, %s252
      %s269 = sphi 0, %s253
      %s273 = sphi 0, %s273
      %s275 = sphi 0, %s273
      %s276 = sphi 0, %s275
      %s290 = sphi 0, %s276
      %s296 = sphi 0, %s298
      %s299 = sphi 0, %s296
      %s300 = sphi 0, %s299
      %s316 = sphi 0, %s300
    $region4: #{tpu_custom_call.1} parent=1 // loop_header_branch
      %22 = sbr.rel (%p20) target = $region8
    $region5: #{tpu_custom_call.1} parent=1 // loop_body
      %s24 = ssub.s32 %s19, 1
      %s25 = ssub.s32 %s19, 2
      %s32 = sadd.s32 1, %s27
      %p33 = scmp.ge.s32.totalorder %s32, 2
      %s34 = scalar_select %p33, 0, %s32
      %s35 = sadd.s32 1, %s26
      %s36 = scalar_select %p33, %s35, %s26
      %p37 = scmp.ge.s32.totalorder %s36, 2
      %s38 = scalar_select %p37, 0, %s36
      %s39 = ssub.s32 %s26, %s38
      %p40 = scmp.eq.s32.totalorder %s39, 0
      %s42 = sadd.s32 %s41, 1
      %s43 = scalar_select %p40, %s41, %s42
      %p46 = pneg %p40
      %p47 = scmp.eq.s32.totalorder %s19, 3
      %p48 = por %p46, %p47
      %p49 = scmp.ne.s32.totalorder %s41, %s44
      %p50 = scmp.eq.s32.totalorder %s19, 0
      %p51 = por %p49, %p50
      %p52 = scmp.ne.s32.totalorder %s41, %s44
      %p53 = scmp.eq.s32.totalorder %s24, 3
      %p54 = por %p52, %p53
      %p55 = scmp.ne.s32.totalorder %s44, %s45
      %p56 = scmp.eq.s32.totalorder %s24, 0
      %p57 = por %p55, %p56
      %p58 = scmp.ne.s32.totalorder %s44, %s45
      %p59 = scmp.eq.s32.totalorder %s25, 3
      %p60 = por %p58, %p59
      %p62 = scmp.ne.s32.totalorder %s45, %s61
      %p63 = scmp.eq.s32.totalorder %s25, 0
      %p64 = por %p62, %p63
      %s65 = ssub.s32 %s26, %s38
      %p66 = scmp.eq.s32.totalorder %s65, 0
      %s68 = sadd.s32 %s67, 1
      %s69 = scalar_select %p66, %s67, %s68
      %p72 = pneg %p66
      %p73 = scmp.eq.s32.totalorder %s19, 3
      %p74 = por %p72, %p73
      %p75 = scmp.ne.s32.totalorder %s67, %s70
      %p76 = scmp.eq.s32.totalorder %s19, 0
      %p77 = por %p75, %p76
      %p78 = scmp.ne.s32.totalorder %s67, %s70
      %p79 = scmp.eq.s32.totalorder %s24, 3
      %p80 = por %p78, %p79
      %p81 = scmp.ne.s32.totalorder %s70, %s71
      %p82 = scmp.eq.s32.totalorder %s24, 0
      %p83 = por %p81, %p82
      %p84 = scmp.ne.s32.totalorder %s70, %s71
      %p85 = scmp.eq.s32.totalorder %s25, 3
      %p86 = por %p84, %p85
      %p88 = scmp.ne.s32.totalorder %s71, %s87
      %p89 = scmp.eq.s32.totalorder %s25, 0
      %p90 = por %p88, %p89
      %s91 = ssub.s32 %s27, %s34
      %p92 = scmp.eq.s32.totalorder %s91, 0
      %s94 = sadd.s32 %s93, 1
      %s95 = scalar_select %p92, %s93, %s94
      %p98 = pneg %p92
      %p99 = scmp.eq.s32.totalorder %s19, 3
      %p100 = por %p98, %p99
      %p101 = scmp.ne.s32.totalorder %s93, %s96
      %p102 = scmp.eq.s32.totalorder %s19, 0
      %p103 = por %p101, %p102
      %p104 = scmp.ne.s32.totalorder %s93, %s96
      %p105 = scmp.eq.s32.totalorder %s24, 3
      %p106 = por %p104, %p105
      %p107 = scmp.ne.s32.totalorder %s96, %s97
      %p108 = scmp.eq.s32.totalorder %s24, 0
      %p109 = por %p107, %p108
      %p110 = scmp.ne.s32.totalorder %s96, %s97
      %p111 = scmp.eq.s32.totalorder %s25, 3
      %p112 = por %p110, %p111
      %p114 = scmp.ne.s32.totalorder %s97, %s113
      %p115 = scmp.eq.s32.totalorder %s25, 0
      %p116 = por %p114, %p115
      %s117 = ssub.s32 %s27, %s34
      %p118 = scmp.eq.s32.totalorder %s117, 0
      %s120 = sadd.s32 %s119, 1
      %s121 = scalar_select %p118, %s119, %s120
      %p124 = pneg %p118
      %p125 = scmp.eq.s32.totalorder %s19, 3
      %p126 = por %p124, %p125
      %p127 = scmp.ne.s32.totalorder %s119, %s122
      %p128 = scmp.eq.s32.totalorder %s19, 0
      %p129 = por %p127, %p128
      %p130 = scmp.ne.s32.totalorder %s119, %s122
      %p131 = scmp.eq.s32.totalorder %s24, 3
      %p132 = por %p130, %p131
      %p133 = scmp.ne.s32.totalorder %s122, %s123
      %p134 = scmp.eq.s32.totalorder %s24, 0
      %p135 = por %p133, %p134
      %p136 = scmp.ne.s32.totalorder %s122, %s123
      %p137 = scmp.eq.s32.totalorder %s25, 3
      %p138 = por %p136, %p137
      %p140 = scmp.ne.s32.totalorder %s123, %s139
      %p141 = scmp.eq.s32.totalorder %s25, 0
      %p142 = por %p140, %p141
      %s143 = ssub.s32 %s27, %s34
      %p144 = scmp.eq.s32.totalorder %s143, 0
      %s146 = sadd.s32 %s145, 1
      %s147 = scalar_select %p144, %s145, %s146
      %p150 = pneg %p144
      %p151 = scmp.eq.s32.totalorder %s19, 3
      %p152 = por %p150, %p151
      %p153 = scmp.ne.s32.totalorder %s145, %s148
      %p154 = scmp.eq.s32.totalorder %s19, 0
      %p155 = por %p153, %p154
      %p156 = scmp.ne.s32.totalorder %s145, %s148
      %p157 = scmp.eq.s32.totalorder %s24, 3
      %p158 = por %p156, %p157
      %p159 = scmp.ne.s32.totalorder %s148, %s149
      %p160 = scmp.eq.s32.totalorder %s24, 0
      %p161 = por %p159, %p160
      %p162 = scmp.ne.s32.totalorder %s148, %s149
      %p163 = scmp.eq.s32.totalorder %s25, 3
      %p164 = por %p162, %p163
      %p166 = scmp.ne.s32.totalorder %s149, %s165
      %p167 = scmp.eq.s32.totalorder %s25, 0
      %p168 = por %p166, %p167
      %s169 = ssub.s32 %s27, %s34
      %p170 = scmp.eq.s32.totalorder %s169, 0
      %s172 = sadd.s32 %s171, 1
      %s173 = scalar_select %p170, %s171, %s172
      %p176 = pneg %p170
      %p177 = scmp.eq.s32.totalorder %s19, 3
      %p178 = por %p176, %p177
      %p179 = scmp.ne.s32.totalorder %s171, %s174
      %p180 = scmp.eq.s32.totalorder %s19, 0
      %p181 = por %p179, %p180
      %p182 = scmp.ne.s32.totalorder %s171, %s174
      %p183 = scmp.eq.s32.totalorder %s24, 3
      %p184 = por %p182, %p183
      %p185 = scmp.ne.s32.totalorder %s174, %s175
      %p186 = scmp.eq.s32.totalorder %s24, 0
      %p187 = por %p185, %p186
      %p188 = scmp.ne.s32.totalorder %s174, %s175
      %p189 = scmp.eq.s32.totalorder %s25, 3
      %p190 = por %p188, %p189
      %p192 = scmp.ne.s32.totalorder %s175, %s191
      %p193 = scmp.eq.s32.totalorder %s25, 0
      %p194 = por %p192, %p193
      %s195 = ssub.s32 %s27, %s34
      %p196 = scmp.eq.s32.totalorder %s195, 0
      %s198 = sadd.s32 %s197, 1
      %s199 = scalar_select %p196, %s197, %s198
      %p202 = pneg %p196
      %p203 = scmp.eq.s32.totalorder %s19, 3
      %p204 = por %p202, %p203
      %p205 = scmp.ne.s32.totalorder %s197, %s200
      %p206 = scmp.eq.s32.totalorder %s19, 0
      %p207 = por %p205, %p206
      %p208 = scmp.ne.s32.totalorder %s197, %s200
      %p209 = scmp.eq.s32.totalorder %s24, 3
      %p210 = por %p208, %p209
      %p211 = scmp.ne.s32.totalorder %s200, %s201
      %p212 = scmp.eq.s32.totalorder %s24, 0
      %p213 = por %p211, %p212
      %p214 = scmp.ne.s32.totalorder %s200, %s201
      %p215 = scmp.eq.s32.totalorder %s25, 3
      %p216 = por %p214, %p215
      %p218 = scmp.ne.s32.totalorder %s201, %s217
      %p219 = scmp.eq.s32.totalorder %s25, 0
      %p220 = por %p218, %p219
      %s221 = ssub.s32 %s27, %s34
      %p222 = scmp.eq.s32.totalorder %s221, 0
      %s224 = sadd.s32 %s223, 1
      %s225 = scalar_select %p222, %s223, %s224
      %p228 = pneg %p222
      %p229 = scmp.eq.s32.totalorder %s19, 3
      %p230 = por %p228, %p229
      %p231 = scmp.ne.s32.totalorder %s223, %s226
      %p232 = scmp.eq.s32.totalorder %s19, 0
      %p233 = por %p231, %p232
      %p234 = scmp.ne.s32.totalorder %s223, %s226
      %p235 = scmp.eq.s32.totalorder %s24, 3
      %p236 = por %p234, %p235
      %p237 = scmp.ne.s32.totalorder %s226, %s227
      %p238 = scmp.eq.s32.totalorder %s24, 0
      %p239 = por %p237, %p238
      %p240 = scmp.ne.s32.totalorder %s226, %s227
      %p241 = scmp.eq.s32.totalorder %s25, 3
      %p242 = por %p240, %p241
      %p244 = scmp.ne.s32.totalorder %s227, %s243
      %p245 = scmp.eq.s32.totalorder %s25, 0
      %p246 = por %p244, %p245
      %s247 = ssub.s32 %s27, %s34
      %p248 = scmp.eq.s32.totalorder %s247, 0
      %s250 = sadd.s32 %s249, 1
      %s251 = scalar_select %p248, %s249, %s250
      %p254 = pneg %p248
      %p255 = scmp.eq.s32.totalorder %s19, 3
      %p256 = por %p254, %p255
      %p257 = scmp.ne.s32.totalorder %s249, %s252
      %p258 = scmp.eq.s32.totalorder %s19, 0
      %p259 = por %p257, %p258
      %p260 = scmp.ne.s32.totalorder %s249, %s252
      %p261 = scmp.eq.s32.totalorder %s24, 3
      %p262 = por %p260, %p261
      %p263 = scmp.ne.s32.totalorder %s252, %s253
      %p264 = scmp.eq.s32.totalorder %s24, 0
      %p265 = por %p263, %p264
      %p266 = scmp.ne.s32.totalorder %s252, %s253
      %p267 = scmp.eq.s32.totalorder %s25, 3
      %p268 = por %p266, %p267
      %p270 = scmp.ne.s32.totalorder %s253, %s269
      %p271 = scmp.eq.s32.totalorder %s25, 0
      %p272 = por %p270, %p271
      %s274 = sadd.s32 %s273, 1
      %p277 = scmp.eq.s32.totalorder %s19, 3
      %p278 = scmp.ne.s32.totalorder %s273, %s275
      %p279 = scmp.eq.s32.totalorder %s19, 0
      %p280 = por %p278, %p279
      %p281 = scmp.ne.s32.totalorder %s273, %s275
      %p282 = scmp.eq.s32.totalorder %s24, 3
      %p283 = por %p281, %p282
      %p284 = scmp.ne.s32.totalorder %s275, %s276
      %p285 = scmp.eq.s32.totalorder %s24, 0
      %p286 = por %p284, %p285
      %p287 = scmp.ne.s32.totalorder %s275, %s276
      %p288 = scmp.eq.s32.totalorder %s25, 3
      %p289 = por %p287, %p288
      %p291 = scmp.ne.s32.totalorder %s276, %s290
      %p292 = scmp.eq.s32.totalorder %s25, 0
      %p293 = por %p291, %p292
      %s294 = ssub.s32 %s26, %s38
      %p295 = scmp.eq.s32.totalorder %s294, 0
      %s297 = sadd.s32 %s296, 1
      %s298 = scalar_select %p295, %s296, %s297
      %p301 = pneg %p295
      %p302 = scmp.eq.s32.totalorder %s19, 3
      %p303 = por %p301, %p302
      %p304 = scmp.ne.s32.totalorder %s296, %s299
      %p305 = scmp.eq.s32.totalorder %s19, 0
      %p306 = por %p304, %p305
      %p307 = scmp.ne.s32.totalorder %s296, %s299
      %p308 = scmp.eq.s32.totalorder %s24, 3
      %p309 = por %p307, %p308
      %p310 = scmp.ne.s32.totalorder %s299, %s300
      %p311 = scmp.eq.s32.totalorder %s24, 0
      %p312 = por %p310, %p311
      %p313 = scmp.ne.s32.totalorder %s299, %s300
      %p314 = scmp.eq.s32.totalorder %s25, 3
      %p315 = por %p313, %p314
      %p317 = scmp.ne.s32.totalorder %s300, %s316
      %p318 = scmp.eq.s32.totalorder %s25, 0
      %p319 = por %p317, %p318
      %p320 = scmp.le.s32.totalorder 1, %s19
      %p321 = scmp.lt.s32.totalorder %s19, 5
      %p322 = pnand %p320, %p321
      %p323 = pneg %p322
      // Predicated region
      $region9: #{tpu_custom_call.1} parent=5 // pred_check
        _
      $region10: #{tpu_custom_call.1} parent=5 // pred_check_branch
        %325 = sbr.rel (%p322) target = $region12
      $region11: #{tpu_custom_call.1} parent=5 // pred_region
        %s326 = ssub.s32 %s19, 1
        // Predicated region
        $region13: #{tpu_custom_call.1} parent=11 // pred_check
          %p327 = pneg %p286
        $region14: #{tpu_custom_call.1} parent=11 // pred_check_branch
          %329 = sbr.rel (%p327) target = $region16
        $region15: #{tpu_custom_call.1} parent=11 // pred_region
          _
        $region16: #{tpu_custom_call.1} parent=11 // pred_fallthru
          _
      $region12: #{tpu_custom_call.1} parent=5 // pred_fallthru
        _
      %p330 = scmp.lt.s32.totalorder %s19, 4
      // Predicated region
      $region17: #{tpu_custom_call.1} parent=5 // pred_check
        %p331 = pneg %p330
      $region18: #{tpu_custom_call.1} parent=5 // pred_check_branch
        %333 = sbr.rel (%p331) target = $region20
      $region19: #{tpu_custom_call.1} parent=5 // pred_region
        // Predicated region
        $region21: #{tpu_custom_call.1} parent=19 // pred_check
          %p334 = pneg %p51
        $region22: #{tpu_custom_call.1} parent=19 // pred_check_branch
          %336 = sbr.rel (%p334) target = $region24
        $region23: #{tpu_custom_call.1} parent=19 // pred_region
          %p337 = scmp.lt.s32.totalorder %s26, 1
          %s338 = scalar_select %p337, %s26, 1
          %s339 = smul.addr %s338, 8
          %s340 = scalar_lea.vmem %s0, %s339
        $region24: #{tpu_custom_call.1} parent=19 // pred_fallthru
          _
        // Predicated region
        $region25: #{tpu_custom_call.1} parent=19 // pred_check
          %p341 = pneg %p77
        $region26: #{tpu_custom_call.1} parent=19 // pred_check_branch
          %343 = sbr.rel (%p341) target = $region28
        $region27: #{tpu_custom_call.1} parent=19 // pred_region
          %p344 = scmp.lt.s32.totalorder %s26, 1
          %s345 = scalar_select %p344, %s26, 1
          %s346 = smul.addr %s345, 8
          %s347 = scalar_lea.vmem %s1, %s346
        $region28: #{tpu_custom_call.1} parent=19 // pred_fallthru
          _
        // Predicated region
        $region29: #{tpu_custom_call.1} parent=19 // pred_check
          %p348 = pneg %p103
        $region30: #{tpu_custom_call.1} parent=19 // pred_check_branch
          %350 = sbr.rel (%p348) target = $region32
        $region31: #{tpu_custom_call.1} parent=19 // pred_region
          %p351 = scmp.lt.s32.totalorder %s27, 1
          %s352 = scalar_select %p351, %s27, 1
          %s353 = smul.addr %s352, 4
          %s354 = smul.addr %s353, 4
          %s355 = scalar_lea.vmem %s2, %s354
        $region32: #{tpu_custom_call.1} parent=19 // pred_fallthru
          _
        // Predicated region
        $region33: #{tpu_custom_call.1} parent=19 // pred_check
          %p356 = pneg %p129
        $region34: #{tpu_custom_call.1} parent=19 // pred_check_branch
          %358 = sbr.rel (%p356) target = $region36
        $region35: #{tpu_custom_call.1} parent=19 // pred_region
          %p359 = scmp.lt.s32.totalorder %s27, 1
          %s360 = scalar_select %p359, %s27, 1
          %s361 = smul.addr %s360, 4
          %s362 = smul.addr %s361, 4
          %s363 = scalar_lea.vmem %s3, %s362
        $region36: #{tpu_custom_call.1} parent=19 // pred_fallthru
          _
        // Predicated region
        $region37: #{tpu_custom_call.1} parent=19 // pred_check
          %p364 = pneg %p155
        $region38: #{tpu_custom_call.1} parent=19 // pred_check_branch
          %366 = sbr.rel (%p364) target = $region40
        $region39: #{tpu_custom_call.1} parent=19 // pred_region
          %p367 = scmp.lt.s32.totalorder %s27, 1
          %s368 = scalar_select %p367, %s27, 1
          %s369 = smul.addr %s368, 4
          %s370 = smul.addr %s369, 4
          %s371 = scalar_lea.vmem %s4, %s370
        $region40: #{tpu_custom_call.1} parent=19 // pred_fallthru
          _
        // Predicated region
        $region41: #{tpu_custom_call.1} parent=19 // pred_check
          %p372 = pneg %p181
        $region42: #{tpu_custom_call.1} parent=19 // pred_check_branch
          %374 = sbr.rel (%p372) target = $region44
        $region43: #{tpu_custom_call.1} parent=19 // pred_region
          %p375 = scmp.lt.s32.totalorder %s27, 1
          %s376 = scalar_select %p375, %s27, 1
          %s377 = smul.addr %s376, 16
          %s378 = smul.addr %s377, 4
          %s379 = scalar_lea.vmem %s5, %s378
        $region44: #{tpu_custom_call.1} parent=19 // pred_fallthru
          _
        // Predicated region
        $region45: #{tpu_custom_call.1} parent=19 // pred_check
          %p380 = pneg %p207
        $region46: #{tpu_custom_call.1} parent=19 // pred_check_branch
          %382 = sbr.rel (%p380) target = $region48
        $region47: #{tpu_custom_call.1} parent=19 // pred_region
          %p383 = scmp.lt.s32.totalorder %s27, 1
          %s384 = scalar_select %p383, %s27, 1
          %s385 = smul.addr %s384, 8
          %s386 = scalar_lea.vmem %s6, %s385
        $region48: #{tpu_custom_call.1} parent=19 // pred_fallthru
          _
        // Predicated region
        $region49: #{tpu_custom_call.1} parent=19 // pred_check
          %p387 = pneg %p233
        $region50: #{tpu_custom_call.1} parent=19 // pred_check_branch
          %389 = sbr.rel (%p387) target = $region52
        $region51: #{tpu_custom_call.1} parent=19 // pred_region
          %p390 = scmp.lt.s32.totalorder %s27, 1
          %s391 = scalar_select %p390, %s27, 1
          %s392 = scalar_lea.vmem %s7, %s391
        $region52: #{tpu_custom_call.1} parent=19 // pred_fallthru
          _
        // Predicated region
        $region53: #{tpu_custom_call.1} parent=19 // pred_check
          %p393 = pneg %p259
        $region54: #{tpu_custom_call.1} parent=19 // pred_check_branch
          %395 = sbr.rel (%p393) target = $region56
        $region55: #{tpu_custom_call.1} parent=19 // pred_region
          %p396 = scmp.lt.s32.totalorder %s27, 1
          %s397 = scalar_select %p396, %s27, 1
          %s398 = scalar_lea.vmem %s8, %s397
        $region56: #{tpu_custom_call.1} parent=19 // pred_fallthru
          _
      $region20: #{tpu_custom_call.1} parent=5 // pred_fallthru
        _
      %p399 = scmp.le.s32.totalorder 1, %s19
      %p400 = scmp.lt.s32.totalorder %s19, 5
      %p401 = pnand %p399, %p400
      %p402 = pneg %p401
      // Predicated region
      $region57: #{tpu_custom_call.1} parent=5 // pred_check
        _
      $region58: #{tpu_custom_call.1} parent=5 // pred_check_branch
        %404 = sbr.rel (%p401) target = $region60
      $region59: #{tpu_custom_call.1} parent=5 // pred_region
        %s405 = ssub.s32 %s19, 1
        %p406 = scmp.lt.s32.totalorder %s28, 1
        %s407 = scalar_select %p406, %s28, 1
        %s408 = smul.addr %s407, 8
        %s409 = scalar_lea.vmem %s0, %s408
        %p410 = pneg %p57
        %p411 = pneg %p54
        %p412 = scmp.lt.s32.totalorder %s28, 1
        %s413 = scalar_select %p412, %s28, 1
        %s414 = smul.addr %s413, 8
        %s415 = scalar_lea.vmem %s1, %s414
        %p416 = pneg %p83
        %p417 = pneg %p80
        %p418 = scmp.lt.s32.totalorder %s29, 1
        %s419 = scalar_select %p418, %s29, 1
        %s420 = smul.addr %s419, 4
        %s421 = smul.addr %s420, 4
        %s422 = scalar_lea.vmem %s2, %s421
        %p423 = pneg %p109
        %p424 = pneg %p106
        %p425 = scmp.lt.s32.totalorder %s29, 1
        %s426 = scalar_select %p425, %s29, 1
        %s427 = smul.addr %s426, 4
        %s428 = smul.addr %s427, 4
        %s429 = scalar_lea.vmem %s3, %s428
        %p430 = pneg %p135
        %p431 = pneg %p132
        %p432 = scmp.lt.s32.totalorder %s29, 1
        %s433 = scalar_select %p432, %s29, 1
        %s434 = smul.addr %s433, 4
        %s435 = smul.addr %s434, 4
        %s436 = scalar_lea.vmem %s4, %s435
        %p437 = pneg %p161
        %p438 = pneg %p158
        %p439 = scmp.lt.s32.totalorder %s29, 1
        %s440 = scalar_select %p439, %s29, 1
        %s441 = smul.addr %s440, 16
        %s442 = smul.addr %s441, 4
        %s443 = scalar_lea.vmem %s5, %s442
        %p444 = pneg %p187
        %p445 = pneg %p184
        %p446 = scmp.lt.s32.totalorder %s29, 1
        %s447 = scalar_select %p446, %s29, 1
        %s448 = smul.addr %s447, 8
        %s449 = scalar_lea.vmem %s6, %s448
        %p450 = pneg %p213
        %p451 = pneg %p210
        %p452 = scmp.lt.s32.totalorder %s29, 1
        %s453 = scalar_select %p452, %s29, 1
        %s454 = scalar_lea.vmem %s7, %s453
        %p455 = pneg %p239
        %p456 = pneg %p236
        %p457 = scmp.lt.s32.totalorder %s29, 1
        %s458 = scalar_select %p457, %s29, 1
        %s459 = scalar_lea.vmem %s8, %s458
        %p460 = pneg %p265
        %p461 = pneg %p262
        %p462 = pneg %p286
        %p463 = pneg %p283
        %p464 = pneg %p312
        %p465 = pneg %p309
        %s466 = sand.u32 %s299, 1
        %s467 = scalar_lea.sflag [#allocation3], %s466
        %s468 = sand.u32 %s299, 1
        %s469 = smul.addr %s468, 8
        %s470 = scalar_lea.vmem [#allocation2], %s469
        %p471 = scmp.lt.s32.totalorder %s28, 1
        %s472 = scalar_select %p471, %s28, 1
        %s473 = smul.addr %s472, 8
        %s474 = scalar_lea.vmem %s0, %s473
        %p475 = scmp.lt.s32.totalorder %s28, 1
        %s476 = scalar_select %p475, %s28, 1
        %s477 = smul.addr %s476, 8
        %s478 = scalar_lea.vmem %s1, %s477
        %p479 = scmp.lt.s32.totalorder %s29, 1
        %s480 = scalar_select %p479, %s29, 1
        %s481 = smul.addr %s480, 4
        %s482 = smul.addr %s481, 4
        %s483 = scalar_lea.vmem %s2, %s482
        %p484 = scmp.lt.s32.totalorder %s29, 1
        %s485 = scalar_select %p484, %s29, 1
        %s486 = smul.addr %s485, 4
        %s487 = smul.addr %s486, 4
        %s488 = scalar_lea.vmem %s3, %s487
        %p489 = scmp.lt.s32.totalorder %s29, 1
        %s490 = scalar_select %p489, %s29, 1
        %s491 = smul.addr %s490, 4
        %s492 = smul.addr %s491, 4
        %s493 = scalar_lea.vmem %s4, %s492
        %p494 = scmp.lt.s32.totalorder %s29, 1
        %s495 = scalar_select %p494, %s29, 1
        %s496 = smul.addr %s495, 16
        %s497 = smul.addr %s496, 4
        %s498 = scalar_lea.vmem %s5, %s497
        %p499 = scmp.lt.s32.totalorder %s29, 1
        %s500 = scalar_select %p499, %s29, 1
        %s501 = smul.addr %s500, 8
        %s502 = scalar_lea.vmem %s6, %s501
        %p503 = scmp.lt.s32.totalorder %s29, 1
        %s504 = scalar_select %p503, %s29, 1
        %s505 = scalar_lea.vmem %s7, %s504
        %p506 = scmp.lt.s32.totalorder %s29, 1
        %s507 = scalar_select %p506, %s29, 1
        %s508 = scalar_lea.vmem %s8, %s507
        %p510 = scmp.eq.s32.totalorder %s29, 0
        // Predicated region
        $region61: #{tpu_custom_call.1} parent=59 // pred_check
          %p511 = pneg %p510
        $region62: #{tpu_custom_call.1} parent=59 // pred_check_branch
          %513 = sbr.rel (%p511) target = $region64
        $region63: #{tpu_custom_call.1} parent=59 // pred_region
          %v514 = vld [vmem:[%s474] sm:$0xff]
          %vm515 = vcmask 261120
          %516 = vst.msk [vmem:[%s470] sm:$0xff] %vm515, %v514
        $region64: #{tpu_custom_call.1} parent=59 // pred_fallthru
          _
        %v517 = vld [vmem:[%s502] sm:$0x1]
        %v518 = vld [vmem:[%s502 + $0x1] sm:$0x1]
        %v519 = vld [vmem:[%s502 + $0x2] sm:$0x1]
        %v520 = vld [vmem:[%s502 + $0x3] sm:$0x1]
        %v521 = vld [vmem:[%s502 + $0x4] sm:$0x1]
        %v522 = vld [vmem:[%s502 + $0x5] sm:$0x1]
        %v523 = vld [vmem:[%s470] sm:$0xff]
        %v524 = vld [vmem:[%s478] sm:$0xff]
        %v525 = vadd.f32 %v523, %v524
        %vm526 = vcmask 261120
        %v527 = vsel %vm526, %v525, 0.0
        %528 = vadd.xlane.f32.xlu0 %v527
        %v529 = vpop.xlane.xlu0 %528
        %v530 = vrcp.pop 32.0
        %v531 = vmul.f32 %v529, %v530
        %v532 = vsub.f32 %v525, %v531
        %v533 = vmul.f32 %v532, %v532
        %v534 = vsel %vm526, %v533, 0.0
        %535 = vadd.xlane.f32.xlu0 %v534
        %v536 = vpop.xlane.xlu0 %535
        %v537 = vmul.f32 %v536, %v530
        %v538 = vadd.f32 %v537, 1e-05
        %v539 = vrsqrt.pop %v538
        %v540 = vmul.f32 %v532, %v539
        %v541 = vlaneseq
        %v542 = vshrl.u32 %v541, 7
        %v543 = vsub.s32 0, %v542
        %v544 = vrot.slane %v517, %v543
        %v545 = vmul.f32 %v540, %v544
        %v546 = vlaneseq
        %v547 = vshrl.u32 %v546, 7
        %v548 = vsub.s32 0, %v547
        %v549 = vrot.slane %v518, %v548
        %v550 = vadd.f32 %v545, %v549
        %v551 = vpack.c.bf16 %v550, %v550
        %v552 = vld [vmem:[%s483] sm:$0xf]
        %v553 = vld [vmem:[%s483 + $0x4] sm:$0xf]
        %v554 = vld [vmem:[%s483 + $0x8] sm:$0xf]
        %v555 = vld [vmem:[%s483 + $0xc] sm:$0xf]
        %v556 = vld [vmem:[%s505] sm:$0x1]
        %v558 = vlaneseq
        %v559 = vshrl.u32 %v558, 7
        %v560 = vsub.s32 0, %v559
        %v561 = vrot.slane %v556, %v560
        %v567 = vunpack.c.l.b16 %v552
        %v568 = vunpack.c.l.b16 %v553
        %v569 = vunpack.c.l.b16 %v554
        %v570 = vunpack.c.l.b16 %v555
        %v571 = vpack.c.b16 %v568, %v567
        %v572 = vpack.c.b16 %v570, %v569
        %v576 = vsel %vm526, %v551, 0
        %578 = vmatprep.subr.bf16.mxu0 0
        %579 = vmatpush1.bf16.msra.mxu0 %v571
        %580 = vmatprep.subr.bf16.mxu0 0
        %581 = vmatpush1.bf16.msra.mxu0 %v572
        %582 = vmatprep.subr.bf16.mxu0 0
        %583 = vmatpush1.bf16.msra.mxu0 0
        %584 = vmatprep.subr.bf16.mxu0 0
        %585 = vmatpush1.bf16.msra.mxu0 0
        %586 = vmatprep.subr.bf16.mxu0 0
        %587 = vmatpush1.bf16.msra.mxu0 0
        %588 = vmatprep.subr.bf16.mxu0 0
        %589 = vmatpush1.bf16.msra.mxu0 0
        %590 = vmatprep.subr.bf16.mxu0 0
        %591 = vmatpush1.bf16.msra.mxu0 0
        %592 = vmatprep.subr.bf16.mxu0 0
        %593 = vmatpush1.bf16.msra.mxu0 0
        %594 = vmatprep.subr.bf16.mxu0 0
        %595 = vmatpush1.bf16.msra.mxu0 0
        %596 = vmatprep.subr.bf16.mxu0 0
        %597 = vmatpush1.bf16.msra.mxu0 0
        %598 = vmatprep.subr.bf16.mxu0 0
        %599 = vmatpush1.bf16.msra.mxu0 0
        %600 = vmatprep.subr.bf16.mxu0 0
        %601 = vmatpush1.bf16.msra.mxu0 0
        %602 = vmatprep.subr.bf16.mxu0 0
        %603 = vmatpush1.bf16.msra.mxu0 0
        %604 = vmatprep.subr.bf16.mxu0 0
        %605 = vmatpush1.bf16.msra.mxu0 0
        %606 = vmatprep.subr.bf16.mxu0 0
        %607 = vmatpush1.bf16.msra.mxu0 0
        %608 = vmatprep.subr.bf16.mxu0 0
        %609 = vmatpush1.bf16.msra.mxu0 0
        %610 = vmatprep.mubr.bf16.mxu0 0
        %611 = vmatmul.mubr.bf16.gmra.mrb[0].mxu0 %v576
        %v612 = vpop.f32.mrb[0].mxu0
        %v613 = vadd.f32 %v561, %v612
        %v614 = vpop.f32.mrb[0].mxu0
        %v615 = vpop.f32.mrb[0].mxu0
        %v616 = vpop.f32.mrb[0].mxu0
        %617 = vdwg.mxu0
        %v618 = vpack.c.bf16 %v613, %v613
        %620 = vrot.lane.b32.xlu0 %v618, 120
        %v621 = vpop.permute.xlu0 %620
        %622 = vrot.lane.b32.xlu0 %v618, 112
        %v623 = vpop.permute.xlu0 %622
        %624 = vrot.lane.b32.xlu0 %v618, 104
        %v625 = vpop.permute.xlu0 %624
        %626 = vrot.lane.b32.xlu0 %v618, 96
        %v627 = vpop.permute.xlu0 %626
        %vm628 = vcmask 64512
        %v630 = vsel %vm628, %v618, 0
        %v633 = vsel %vm628, %v627, 0
        %635 = vmatprep.subr.bf16.mxu0 0
        %636 = vmatpush1.bf16.xpose.msra.mxu0 %v633
        %637 = vmatprep.subr.bf16.mxu0 0
        %638 = vmatpush1.bf16.xpose.msra.mxu0 0
        %639 = vmatprep.subr.bf16.mxu0 0
        %640 = vmatpush1.bf16.xpose.msra.mxu0 0
        %641 = vmatprep.subr.bf16.mxu0 0
        %642 = vmatpush1.bf16.xpose.msra.mxu0 0
        %643 = vmatprep.subr.bf16.mxu0 0
        %644 = vmatpush1.bf16.xpose.msra.mxu0 0
        %645 = vmatprep.subr.bf16.mxu0 0
        %646 = vmatpush1.bf16.xpose.msra.mxu0 0
        %647 = vmatprep.subr.bf16.mxu0 0
        %648 = vmatpush1.bf16.xpose.msra.mxu0 0
        %649 = vmatprep.subr.bf16.mxu0 0
        %650 = vmatpush1.bf16.xpose.msra.mxu0 0
        %651 = vmatprep.subr.bf16.mxu0 0
        %652 = vmatpush1.bf16.xpose.msra.mxu0 0
        %653 = vmatprep.subr.bf16.mxu0 0
        %654 = vmatpush1.bf16.xpose.msra.mxu0 0
        %655 = vmatprep.subr.bf16.mxu0 0
        %656 = vmatpush1.bf16.xpose.msra.mxu0 0
        %657 = vmatprep.subr.bf16.mxu0 0
        %658 = vmatpush1.bf16.xpose.msra.mxu0 0
        %659 = vmatprep.subr.bf16.mxu0 0
        %660 = vmatpush1.bf16.xpose.msra.mxu0 0
        %661 = vmatprep.subr.bf16.mxu0 0
        %662 = vmatpush1.bf16.xpose.msra.mxu0 0
        %663 = vmatprep.subr.bf16.mxu0 0
        %664 = vmatpush1.bf16.xpose.msra.mxu0 0
        %665 = vmatprep.subr.bf16.mxu0 0
        %666 = vmatpush1.bf16.xpose.msra.mxu0 0
        %667 = vmatprep.mubr.bf16.mxu0 0
        %668 = vmatmul.mubr.bf16.gmra.mrb[0].mxu0 %v630
        %v669 = vpop.f32.mrb[0].mxu0
        %v670 = vadd.f32 0.0, %v669
        %v671 = vpop.f32.mrb[0].mxu0
        %v672 = vpop.f32.mrb[0].mxu0
        %v673 = vpop.f32.mrb[0].mxu0
        %674 = vdwg.mxu0
        %675 = vrot.lane.b32.xlu0 %v621, 96
        %v676 = vpop.permute.xlu0 %675
        %v678 = vsel %vm628, %v621, 0
        %v681 = vsel %vm628, %v676, 0
        %683 = vmatprep.subr.bf16.mxu0 0
        %684 = vmatpush1.bf16.xpose.msra.mxu0 %v681
        %685 = vmatprep.subr.bf16.mxu0 0
        %686 = vmatpush1.bf16.xpose.msra.mxu0 0
        %687 = vmatprep.subr.bf16.mxu0 0
        %688 = vmatpush1.bf16.xpose.msra.mxu0 0
        %689 = vmatprep.subr.bf16.mxu0 0
        %690 = vmatpush1.bf16.xpose.msra.mxu0 0
        %691 = vmatprep.subr.bf16.mxu0 0
        %692 = vmatpush1.bf16.xpose.msra.mxu0 0
        %693 = vmatprep.subr.bf16.mxu0 0
        %694 = vmatpush1.bf16.xpose.msra.mxu0 0
        %695 = vmatprep.subr.bf16.mxu0 0
        %696 = vmatpush1.bf16.xpose.msra.mxu0 0
        %697 = vmatprep.subr.bf16.mxu0 0
        %698 = vmatpush1.bf16.xpose.msra.mxu0 0
        %699 = vmatprep.subr.bf16.mxu0 0
        %700 = vmatpush1.bf16.xpose.msra.mxu0 0
        %701 = vmatprep.subr.bf16.mxu0 0
        %702 = vmatpush1.bf16.xpose.msra.mxu0 0
        %703 = vmatprep.subr.bf16.mxu0 0
        %704 = vmatpush1.bf16.xpose.msra.mxu0 0
        %705 = vmatprep.subr.bf16.mxu0 0
        %706 = vmatpush1.bf16.xpose.msra.mxu0 0
        %707 = vmatprep.subr.bf16.mxu0 0
        %708 = vmatpush1.bf16.xpose.msra.mxu0 0
        %709 = vmatprep.subr.bf16.mxu0 0
        %710 = vmatpush1.bf16.xpose.msra.mxu0 0
        %711 = vmatprep.subr.bf16.mxu0 0
        %712 = vmatpush1.bf16.xpose.msra.mxu0 0
        %713 = vmatprep.subr.bf16.mxu0 0
        %714 = vmatpush1.bf16.xpose.msra.mxu0 0
        %715 = vmatprep.mubr.bf16.mxu0 0
        %716 = vmatmul.mubr.bf16.gmra.mrb[0].mxu0 %v678
        %v717 = vpop.f32.mrb[0].mxu0
        %v718 = vadd.f32 0.0, %v717
        %v719 = vpop.f32.mrb[0].mxu0
        %v720 = vpop.f32.mrb[0].mxu0
        %v721 = vpop.f32.mrb[0].mxu0
        %722 = vdwg.mxu0
        %723 = vrot.lane.b32.xlu0 %v623, 96
        %v724 = vpop.permute.xlu0 %723
        %v726 = vsel %vm628, %v623, 0
        %v729 = vsel %vm628, %v724, 0
        %731 = vmatprep.subr.bf16.mxu0 0
        %732 = vmatpush1.bf16.xpose.msra.mxu0 %v729
        %733 = vmatprep.subr.bf16.mxu0 0
        %734 = vmatpush1.bf16.xpose.msra.mxu0 0
        %735 = vmatprep.subr.bf16.mxu0 0
        %736 = vmatpush1.bf16.xpose.msra.mxu0 0
        %737 = vmatprep.subr.bf16.mxu0 0
        %738 = vmatpush1.bf16.xpose.msra.mxu0 0
        %739 = vmatprep.subr.bf16.mxu0 0
        %740 = vmatpush1.bf16.xpose.msra.mxu0 0
        %741 = vmatprep.subr.bf16.mxu0 0
        %742 = vmatpush1.bf16.xpose.msra.mxu0 0
        %743 = vmatprep.subr.bf16.mxu0 0
        %744 = vmatpush1.bf16.xpose.msra.mxu0 0
        %745 = vmatprep.subr.bf16.mxu0 0
        %746 = vmatpush1.bf16.xpose.msra.mxu0 0
        %747 = vmatprep.subr.bf16.mxu0 0
        %748 = vmatpush1.bf16.xpose.msra.mxu0 0
        %749 = vmatprep.subr.bf16.mxu0 0
        %750 = vmatpush1.bf16.xpose.msra.mxu0 0
        %751 = vmatprep.subr.bf16.mxu0 0
        %752 = vmatpush1.bf16.xpose.msra.mxu0 0
        %753 = vmatprep.subr.bf16.mxu0 0
        %754 = vmatpush1.bf16.xpose.msra.mxu0 0
        %755 = vmatprep.subr.bf16.mxu0 0
        %756 = vmatpush1.bf16.xpose.msra.mxu0 0
        %757 = vmatprep.subr.bf16.mxu0 0
        %758 = vmatpush1.bf16.xpose.msra.mxu0 0
        %759 = vmatprep.subr.bf16.mxu0 0
        %760 = vmatpush1.bf16.xpose.msra.mxu0 0
        %761 = vmatprep.subr.bf16.mxu0 0
        %762 = vmatpush1.bf16.xpose.msra.mxu0 0
        %763 = vmatprep.mubr.bf16.mxu0 0
        %764 = vmatmul.mubr.bf16.gmra.mrb[0].mxu0 %v726
        %v765 = vpop.f32.mrb[0].mxu0
        %v766 = vadd.f32 0.0, %v765
        %v767 = vpop.f32.mrb[0].mxu0
        %v768 = vpop.f32.mrb[0].mxu0
        %v769 = vpop.f32.mrb[0].mxu0
        %770 = vdwg.mxu0
        %771 = vrot.lane.b32.xlu0 %v625, 96
        %v772 = vpop.permute.xlu0 %771
        %v774 = vsel %vm628, %v625, 0
        %v777 = vsel %vm628, %v772, 0
        %779 = vmatprep.subr.bf16.mxu0 0
        %780 = vmatpush1.bf16.xpose.msra.mxu0 %v777
        %781 = vmatprep.subr.bf16.mxu0 0
        %782 = vmatpush1.bf16.xpose.msra.mxu0 0
        %783 = vmatprep.subr.bf16.mxu0 0
        %784 = vmatpush1.bf16.xpose.msra.mxu0 0
        %785 = vmatprep.subr.bf16.mxu0 0
        %786 = vmatpush1.bf16.xpose.msra.mxu0 0
        %787 = vmatprep.subr.bf16.mxu0 0
        %788 = vmatpush1.bf16.xpose.msra.mxu0 0
        %789 = vmatprep.subr.bf16.mxu0 0
        %790 = vmatpush1.bf16.xpose.msra.mxu0 0
        %791 = vmatprep.subr.bf16.mxu0 0
        %792 = vmatpush1.bf16.xpose.msra.mxu0 0
        %793 = vmatprep.subr.bf16.mxu0 0
        %794 = vmatpush1.bf16.xpose.msra.mxu0 0
        %795 = vmatprep.subr.bf16.mxu0 0
        %796 = vmatpush1.bf16.xpose.msra.mxu0 0
        %797 = vmatprep.subr.bf16.mxu0 0
        %798 = vmatpush1.bf16.xpose.msra.mxu0 0
        %799 = vmatprep.subr.bf16.mxu0 0
        %800 = vmatpush1.bf16.xpose.msra.mxu0 0
        %801 = vmatprep.subr.bf16.mxu0 0
        %802 = vmatpush1.bf16.xpose.msra.mxu0 0
        %803 = vmatprep.subr.bf16.mxu0 0
        %804 = vmatpush1.bf16.xpose.msra.mxu0 0
        %805 = vmatprep.subr.bf16.mxu0 0
        %806 = vmatpush1.bf16.xpose.msra.mxu0 0
        %807 = vmatprep.subr.bf16.mxu0 0
        %808 = vmatpush1.bf16.xpose.msra.mxu0 0
        %809 = vmatprep.subr.bf16.mxu0 0
        %810 = vmatpush1.bf16.xpose.msra.mxu0 0
        %811 = vmatprep.mubr.bf16.mxu0 0
        %812 = vmatmul.mubr.bf16.gmra.mrb[0].mxu0 %v774
        %v813 = vpop.f32.mrb[0].mxu0
        %v814 = vadd.f32 0.0, %v813
        %v815 = vpop.f32.mrb[0].mxu0
        %v816 = vpop.f32.mrb[0].mxu0
        %v817 = vpop.f32.mrb[0].mxu0
        %818 = vdwg.mxu0
        %v819 = vsel %vm628, %v670, -inf
        %820 = vmax.xlane.f32.xlu0 %v819
        %v821 = vpop.xlane.xlu0 %820
        %v822 = vsel %vm628, %v718, -inf
        %823 = vmax.xlane.f32.xlu0 %v822
        %v824 = vpop.xlane.xlu0 %823
        %v825 = vsel %vm628, %v766, -inf
        %826 = vmax.xlane.f32.xlu0 %v825
        %v827 = vpop.xlane.xlu0 %826
        %v828 = vsel %vm628, %v814, -inf
        %829 = vmax.xlane.f32.xlu0 %v828
        %v830 = vpop.xlane.xlu0 %829
        %v831 = vsub.f32 %v670, %v821
        %v832 = vsub.f32 %v718, %v824
        %v833 = vsub.f32 %v766, %v827
        %v834 = vsub.f32 %v814, %v830
        %v835 = vmul.f32 %v831, 1.442695
        %v836 = vpow.pop %v835
        %v837 = vmul.f32 %v832, 1.442695
        %v838 = vpow.pop %v837
        %v839 = vmul.f32 %v833, 1.442695
        %v840 = vpow.pop %v839
        %v841 = vmul.f32 %v834, 1.442695
        %v842 = vpow.pop %v841
        %v843 = vsel %vm628, %v836, 0.0
        %844 = vadd.xlane.f32.xlu0 %v843
        %v845 = vpop.xlane.xlu0 %844
        %v846 = vsel %vm628, %v838, 0.0
        %847 = vadd.xlane.f32.xlu0 %v846
        %v848 = vpop.xlane.xlu0 %847
        %v849 = vsel %vm628, %v840, 0.0
        %850 = vadd.xlane.f32.xlu0 %v849
        %v851 = vpop.xlane.xlu0 %850
        %v852 = vsel %vm628, %v842, 0.0
        %853 = vadd.xlane.f32.xlu0 %v852
        %v854 = vpop.xlane.xlu0 %853
        %v855 = vrcp.pop %v845
        %v856 = vrcp.pop %v848
        %v857 = vrcp.pop %v851
        %v858 = vrcp.pop %v854
        %v859 = vmul.f32 %v836, %v855
        %v860 = vmul.f32 %v838, %v856
        %v861 = vmul.f32 %v840, %v857
        %v862 = vmul.f32 %v842, %v858
        %v863 = vpack.c.bf16 %v859, %v859
        %v864 = vpack.c.bf16 %v860, %v860
        %v865 = vpack.c.bf16 %v861, %v861
        %v866 = vpack.c.bf16 %v862, %v862
        %867 = vrot.lane.b32.xlu0 %v618, 64
        %v868 = vpop.permute.xlu0 %867
        %v870 = vsel %vm628, %v863, 0
        %vm872 = vcmask 1043456
        %v874 = vsel %vm872, %v868, 0
        %876 = vmatprep.subr.bf16.mxu0 0
        %877 = vmatpush1.bf16.msra.mxu0 %v874
        %878 = vmatprep.subr.bf16.mxu0 0
        %879 = vmatpush1.bf16.msra.mxu0 0
        %880 = vmatprep.subr.bf16.mxu0 0
        %881 = vmatpush1.bf16.msra.mxu0 0
        %882 = vmatprep.subr.bf16.mxu0 0
        %883 = vmatpush1.bf16.msra.mxu0 0
        %884 = vmatprep.subr.bf16.mxu0 0
        %885 = vmatpush1.bf16.msra.mxu0 0
        %886 = vmatprep.subr.bf16.mxu0 0
        %887 = vmatpush1.bf16.msra.mxu0 0
        %888 = vmatprep.subr.bf16.mxu0 0
        %889 = vmatpush1.bf16.msra.mxu0 0
        %890 = vmatprep.subr.bf16.mxu0 0
        %891 = vmatpush1.bf16.msra.mxu0 0
        %892 = vmatprep.subr.bf16.mxu0 0
        %893 = vmatpush1.bf16.msra.mxu0 0
        %894 = vmatprep.subr.bf16.mxu0 0
        %895 = vmatpush1.bf16.msra.mxu0 0
        %896 = vmatprep.subr.bf16.mxu0 0
        %897 = vmatpush1.bf16.msra.mxu0 0
        %898 = vmatprep.subr.bf16.mxu0 0
        %899 = vmatpush1.bf16.msra.mxu0 0
        %900 = vmatprep.subr.bf16.mxu0 0
        %901 = vmatpush1.bf16.msra.mxu0 0
        %902 = vmatprep.subr.bf16.mxu0 0
        %903 = vmatpush1.bf16.msra.mxu0 0
        %904 = vmatprep.subr.bf16.mxu0 0
        %905 = vmatpush1.bf16.msra.mxu0 0
        %906 = vmatprep.subr.bf16.mxu0 0
        %907 = vmatpush1.bf16.msra.mxu0 0
        %908 = vmatprep.mubr.bf16.mxu0 0
        %909 = vmatmul.mubr.bf16.gmra.mrb[0].mxu0 %v870
        %v910 = vpop.f32.mrb[0].mxu0
        %v911 = vadd.f32 0.0, %v910
        %v912 = vpop.f32.mrb[0].mxu0
        %v913 = vpop.f32.mrb[0].mxu0
        %v914 = vpop.f32.mrb[0].mxu0
        %915 = vdwg.mxu0
        %916 = vrot.lane.b32.xlu0 %v621, 64
        %v917 = vpop.permute.xlu0 %916
        %v919 = vsel %vm628, %v864, 0
        %v922 = vsel %vm872, %v917, 0
        %924 = vmatprep.subr.bf16.mxu0 0
        %925 = vmatpush1.bf16.msra.mxu0 %v922
        %926 = vmatprep.subr.bf16.mxu0 0
        %927 = vmatpush1.bf16.msra.mxu0 0
        %928 = vmatprep.subr.bf16.mxu0 0
        %929 = vmatpush1.bf16.msra.mxu0 0
        %930 = vmatprep.subr.bf16.mxu0 0
        %931 = vmatpush1.bf16.msra.mxu0 0
        %932 = vmatprep.subr.bf16.mxu0 0
        %933 = vmatpush1.bf16.msra.mxu0 0
        %934 = vmatprep.subr.bf16.mxu0 0
        %935 = vmatpush1.bf16.msra.mxu0 0
        %936 = vmatprep.subr.bf16.mxu0 0
        %937 = vmatpush1.bf16.msra.mxu0 0
        %938 = vmatprep.subr.bf16.mxu0 0
        %939 = vmatpush1.bf16.msra.mxu0 0
        %940 = vmatprep.subr.bf16.mxu0 0
        %941 = vmatpush1.bf16.msra.mxu0 0
        %942 = vmatprep.subr.bf16.mxu0 0
        %943 = vmatpush1.bf16.msra.mxu0 0
        %944 = vmatprep.subr.bf16.mxu0 0
        %945 = vmatpush1.bf16.msra.mxu0 0
        %946 = vmatprep.subr.bf16.mxu0 0
        %947 = vmatpush1.bf16.msra.mxu0 0
        %948 = vmatprep.subr.bf16.mxu0 0
        %949 = vmatpush1.bf16.msra.mxu0 0
        %950 = vmatprep.subr.bf16.mxu0 0
        %951 = vmatpush1.bf16.msra.mxu0 0
        %952 = vmatprep.subr.bf16.mxu0 0
        %953 = vmatpush1.bf16.msra.mxu0 0
        %954 = vmatprep.subr.bf16.mxu0 0
        %955 = vmatpush1.bf16.msra.mxu0 0
        %956 = vmatprep.mubr.bf16.mxu0 0
        %957 = vmatmul.mubr.bf16.gmra.mrb[0].mxu0 %v919
        %v958 = vpop.f32.mrb[0].mxu0
        %v959 = vadd.f32 0.0, %v958
        %v960 = vpop.f32.mrb[0].mxu0
        %v961 = vpop.f32.mrb[0].mxu0
        %v962 = vpop.f32.mrb[0].mxu0
        %963 = vdwg.mxu0
        %964 = vrot.lane.b32.xlu0 %v623, 64
        %v965 = vpop.permute.xlu0 %964
        %v967 = vsel %vm628, %v865, 0
        %v970 = vsel %vm872, %v965, 0
        %972 = vmatprep.subr.bf16.mxu0 0
        %973 = vmatpush1.bf16.msra.mxu0 %v970
        %974 = vmatprep.subr.bf16.mxu0 0
        %975 = vmatpush1.bf16.msra.mxu0 0
        %976 = vmatprep.subr.bf16.mxu0 0
        %977 = vmatpush1.bf16.msra.mxu0 0
        %978 = vmatprep.subr.bf16.mxu0 0
        %979 = vmatpush1.bf16.msra.mxu0 0
        %980 = vmatprep.subr.bf16.mxu0 0
        %981 = vmatpush1.bf16.msra.mxu0 0
        %982 = vmatprep.subr.bf16.mxu0 0
        %983 = vmatpush1.bf16.msra.mxu0 0
        %984 = vmatprep.subr.bf16.mxu0 0
        %985 = vmatpush1.bf16.msra.mxu0 0
        %986 = vmatprep.subr.bf16.mxu0 0
        %987 = vmatpush1.bf16.msra.mxu0 0
        %988 = vmatprep.subr.bf16.mxu0 0
        %989 = vmatpush1.bf16.msra.mxu0 0
        %990 = vmatprep.subr.bf16.mxu0 0
        %991 = vmatpush1.bf16.msra.mxu0 0
        %992 = vmatprep.subr.bf16.mxu0 0
        %993 = vmatpush1.bf16.msra.mxu0 0
        %994 = vmatprep.subr.bf16.mxu0 0
        %995 = vmatpush1.bf16.msra.mxu0 0
        %996 = vmatprep.subr.bf16.mxu0 0
        %997 = vmatpush1.bf16.msra.mxu0 0
        %998 = vmatprep.subr.bf16.mxu0 0
        %999 = vmatpush1.bf16.msra.mxu0 0
        %1000 = vmatprep.subr.bf16.mxu0 0
        %1001 = vmatpush1.bf16.msra.mxu0 0
        %1002 = vmatprep.subr.bf16.mxu0 0
        %1003 = vmatpush1.bf16.msra.mxu0 0
        %1004 = vmatprep.mubr.bf16.mxu0 0
        %1005 = vmatmul.mubr.bf16.gmra.mrb[0].mxu0 %v967
        %v1006 = vpop.f32.mrb[0].mxu0
        %v1007 = vadd.f32 0.0, %v1006
        %v1008 = vpop.f32.mrb[0].mxu0
        %v1009 = vpop.f32.mrb[0].mxu0
        %v1010 = vpop.f32.mrb[0].mxu0
        %1011 = vdwg.mxu0
        %1012 = vrot.lane.b32.xlu0 %v625, 64
        %v1013 = vpop.permute.xlu0 %1012
        %v1015 = vsel %vm628, %v866, 0
        %v1018 = vsel %vm872, %v1013, 0
        %1020 = vmatprep.subr.bf16.mxu0 0
        %1021 = vmatpush1.bf16.msra.mxu0 %v1018
        %1022 = vmatprep.subr.bf16.mxu0 0
        %1023 = vmatpush1.bf16.msra.mxu0 0
        %1024 = vmatprep.subr.bf16.mxu0 0
        %1025 = vmatpush1.bf16.msra.mxu0 0
        %1026 = vmatprep.subr.bf16.mxu0 0
        %1027 = vmatpush1.bf16.msra.mxu0 0
        %1028 = vmatprep.subr.bf16.mxu0 0
        %1029 = vmatpush1.bf16.msra.mxu0 0
        %1030 = vmatprep.subr.bf16.mxu0 0
        %1031 = vmatpush1.bf16.msra.mxu0 0
        %1032 = vmatprep.subr.bf16.mxu0 0
        %1033 = vmatpush1.bf16.msra.mxu0 0
        %1034 = vmatprep.subr.bf16.mxu0 0
        %1035 = vmatpush1.bf16.msra.mxu0 0
        %1036 = vmatprep.subr.bf16.mxu0 0
        %1037 = vmatpush1.bf16.msra.mxu0 0
        %1038 = vmatprep.subr.bf16.mxu0 0
        %1039 = vmatpush1.bf16.msra.mxu0 0
        %1040 = vmatprep.subr.bf16.mxu0 0
        %1041 = vmatpush1.bf16.msra.mxu0 0
        %1042 = vmatprep.subr.bf16.mxu0 0
        %1043 = vmatpush1.bf16.msra.mxu0 0
        %1044 = vmatprep.subr.bf16.mxu0 0
        %1045 = vmatpush1.bf16.msra.mxu0 0
        %1046 = vmatprep.subr.bf16.mxu0 0
        %1047 = vmatpush1.bf16.msra.mxu0 0
        %1048 = vmatprep.subr.bf16.mxu0 0
        %1049 = vmatpush1.bf16.msra.mxu0 0
        %1050 = vmatprep.subr.bf16.mxu0 0
        %1051 = vmatpush1.bf16.msra.mxu0 0
        %1052 = vmatprep.mubr.bf16.mxu0 0
        %1053 = vmatmul.mubr.bf16.gmra.mrb[0].mxu0 %v1015
        %v1054 = vpop.f32.mrb[0].mxu0
        %v1055 = vadd.f32 0.0, %v1054
        %v1056 = vpop.f32.mrb[0].mxu0
        %v1057 = vpop.f32.mrb[0].mxu0
        %v1058 = vpop.f32.mrb[0].mxu0
        %1059 = vdwg.mxu0
        %v1060 = vpack.c.bf16 %v911, %v911
        %v1061 = vpack.c.bf16 %v959, %v959
        %v1062 = vpack.c.bf16 %v1007, %v1007
        %v1063 = vpack.c.bf16 %v1055, %v1055
        %1065 = vrot.lane.b32.xlu0 %v1061, 8
        %v1066 = vpop.permute.xlu0 %1065
        %1068 = vrot.lane.b32.xlu0 %v1062, 16
        %v1069 = vpop.permute.xlu0 %1068
        %1071 = vrot.lane.b32.xlu0 %v1063, 24
        %v1072 = vpop.permute.xlu0 %1071
        %v1075 = vsel %vm628, %v1060, %v1066
        %vm1076 = vcmask 130048
        %v1078 = vsel %vm1076, %v1075, %v1069
        %vm1079 = vcmask 195584
        %v1081 = vsel %vm1079, %v1078, %v1072
        %v1082 = vld [vmem:[%s488] sm:$0xf]
        %v1083 = vld [vmem:[%s488 + $0x4] sm:$0xf]
        %v1084 = vld [vmem:[%s488 + $0x8] sm:$0xf]
        %v1085 = vld [vmem:[%s488 + $0xc] sm:$0xf]
        %v1086 = vlaneseq
        %v1087 = vshrl.u32 %v1086, 7
        %v1088 = vsub.s32 0, %v1087
        %v1089 = vrot.slane %v519, %v1088
        %v1094 = vunpack.c.l.b16 %v1082
        %v1095 = vunpack.c.l.b16 %v1083
        %v1096 = vunpack.c.l.b16 %v1084
        %v1097 = vunpack.c.l.b16 %v1085
        %v1098 = vpack.c.b16 %v1095, %v1094
        %v1099 = vpack.c.b16 %v1097, %v1096
        %v1102 = vsel %vm526, %v1081, 0
        %1104 = vmatprep.subr.bf16.mxu0 0
        %1105 = vmatpush1.bf16.msra.mxu0 %v1098
        %1106 = vmatprep.subr.bf16.mxu0 0
        %1107 = vmatpush1.bf16.msra.mxu0 %v1099
        %1108 = vmatprep.subr.bf16.mxu0 0
        %1109 = vmatpush1.bf16.msra.mxu0 0
        %1110 = vmatprep.subr.bf16.mxu0 0
        %1111 = vmatpush1.bf16.msra.mxu0 0
        %1112 = vmatprep.subr.bf16.mxu0 0
        %1113 = vmatpush1.bf16.msra.mxu0 0
        %1114 = vmatprep.subr.bf16.mxu0 0
        %1115 = vmatpush1.bf16.msra.mxu0 0
        %1116 = vmatprep.subr.bf16.mxu0 0
        %1117 = vmatpush1.bf16.msra.mxu0 0
        %1118 = vmatprep.subr.bf16.mxu0 0
        %1119 = vmatpush1.bf16.msra.mxu0 0
        %1120 = vmatprep.subr.bf16.mxu0 0
        %1121 = vmatpush1.bf16.msra.mxu0 0
        %1122 = vmatprep.subr.bf16.mxu0 0
        %1123 = vmatpush1.bf16.msra.mxu0 0
        %1124 = vmatprep.subr.bf16.mxu0 0
        %1125 = vmatpush1.bf16.msra.mxu0 0
        %1126 = vmatprep.subr.bf16.mxu0 0
        %1127 = vmatpush1.bf16.msra.mxu0 0
        %1128 = vmatprep.subr.bf16.mxu0 0
        %1129 = vmatpush1.bf16.msra.mxu0 0
        %1130 = vmatprep.subr.bf16.mxu0 0
        %1131 = vmatpush1.bf16.msra.mxu0 0
        %1132 = vmatprep.subr.bf16.mxu0 0
        %1133 = vmatpush1.bf16.msra.mxu0 0
        %1134 = vmatprep.subr.bf16.mxu0 0
        %1135 = vmatpush1.bf16.msra.mxu0 0
        %1136 = vmatprep.mubr.bf16.mxu0 0
        %1137 = vmatmul.mubr.bf16.gmra.mrb[0].mxu0 %v1102
        %v1138 = vpop.f32.mrb[0].mxu0
        %v1139 = vadd.f32 %v1089, %v1138
        %v1140 = vpop.f32.mrb[0].mxu0
        %v1141 = vpop.f32.mrb[0].mxu0
        %v1142 = vpop.f32.mrb[0].mxu0
        %1143 = vdwg.mxu0
        %v1144 = vadd.f32 %v525, %v1139
        %v1145 = vsel %vm526, %v1144, 0.0
        %1146 = vadd.xlane.f32.xlu0 %v1145
        %v1147 = vpop.xlane.xlu0 %1146
        %v1148 = vmul.f32 %v1147, %v530
        %v1149 = vsub.f32 %v1144, %v1148
        %v1150 = vmul.f32 %v1149, %v1149
        %v1151 = vsel %vm526, %v1150, 0.0
        %1152 = vadd.xlane.f32.xlu0 %v1151
        %v1153 = vpop.xlane.xlu0 %1152
        %v1154 = vmul.f32 %v1153, %v530
        %v1155 = vadd.f32 %v1154, 1e-05
        %v1156 = vrsqrt.pop %v1155
        %v1157 = vmul.f32 %v1149, %v1156
        %v1158 = vlaneseq
        %v1159 = vshrl.u32 %v1158, 7
        %v1160 = vsub.s32 0, %v1159
        %v1161 = vrot.slane %v520, %v1160
        %v1162 = vmul.f32 %v1157, %v1161
        %v1163 = vlaneseq
        %v1164 = vshrl.u32 %v1163, 7
        %v1165 = vsub.s32 0, %v1164
        %v1166 = vrot.slane %v521, %v1165
        %v1167 = vadd.f32 %v1162, %v1166
        %v1168 = vpack.c.bf16 %v1167, %v1167
        %v1169 = vld [vmem:[%s493] sm:$0xf]
        %v1170 = vld [vmem:[%s493 + $0x4] sm:$0xf]
        %v1171 = vld [vmem:[%s493 + $0x8] sm:$0xf]
        %v1172 = vld [vmem:[%s493 + $0xc] sm:$0xf]
        %v1173 = vld [vmem:[%s508] sm:$0x1]
        %v1175 = vlaneseq
        %v1176 = vshrl.u32 %v1175, 7
        %v1177 = vsub.s32 0, %v1176
        %v1178 = vrot.slane %v1173, %v1177
        %v1184 = vunpack.c.l.b16 %v1169
        %v1185 = vunpack.c.l.b16 %v1170
        %v1186 = vunpack.c.l.b16 %v1171
        %v1187 = vunpack.c.l.b16 %v1172
        %v1188 = vpack.c.b16 %v1185, %v1184
        %v1189 = vpack.c.b16 %v1187, %v1186
        %v1193 = vsel %vm526, %v1168, 0
        %1195 = vmatprep.subr.bf16.mxu0 0
        %1196 = vmatpush1.bf16.msra.mxu0 %v1188
        %1197 = vmatprep.subr.bf16.mxu0 0
        %1198 = vmatpush1.bf16.msra.mxu0 %v1189
        %1199 = vmatprep.subr.bf16.mxu0 0
        %1200 = vmatpush1.bf16.msra.mxu0 0
        %1201 = vmatprep.subr.bf16.mxu0 0
        %1202 = vmatpush1.bf16.msra.mxu0 0
        %1203 = vmatprep.subr.bf16.mxu0 0
        %1204 = vmatpush1.bf16.msra.mxu0 0
        %1205 = vmatprep.subr.bf16.mxu0 0
        %1206 = vmatpush1.bf16.msra.mxu0 0
        %1207 = vmatprep.subr.bf16.mxu0 0
        %1208 = vmatpush1.bf16.msra.mxu0 0
        %1209 = vmatprep.subr.bf16.mxu0 0
        %1210 = vmatpush1.bf16.msra.mxu0 0
        %1211 = vmatprep.subr.bf16.mxu0 0
        %1212 = vmatpush1.bf16.msra.mxu0 0
        %1213 = vmatprep.subr.bf16.mxu0 0
        %1214 = vmatpush1.bf16.msra.mxu0 0
        %1215 = vmatprep.subr.bf16.mxu0 0
        %1216 = vmatpush1.bf16.msra.mxu0 0
        %1217 = vmatprep.subr.bf16.mxu0 0
        %1218 = vmatpush1.bf16.msra.mxu0 0
        %1219 = vmatprep.subr.bf16.mxu0 0
        %1220 = vmatpush1.bf16.msra.mxu0 0
        %1221 = vmatprep.subr.bf16.mxu0 0
        %1222 = vmatpush1.bf16.msra.mxu0 0
        %1223 = vmatprep.subr.bf16.mxu0 0
        %1224 = vmatpush1.bf16.msra.mxu0 0
        %1225 = vmatprep.subr.bf16.mxu0 0
        %1226 = vmatpush1.bf16.msra.mxu0 0
        %1227 = vmatprep.mubr.bf16.mxu0 0
        %1228 = vmatmul.mubr.bf16.gmra.mrb[0].mxu0 %v1193
        %v1229 = vpop.f32.mrb[0].mxu0
        %v1230 = vadd.f32 %v1178, %v1229
        %v1231 = vpop.f32.mrb[0].mxu0
        %v1232 = vpop.f32.mrb[0].mxu0
        %v1233 = vpop.f32.mrb[0].mxu0
        %1234 = vdwg.mxu0
        %v1235 = vmul.f32 %v1230, %v1230
        %v1236 = vmul.f32 %v1230, %v1235
        %v1237 = vmul.f32 %v1236, 0.044715
        %v1238 = vadd.f32 %v1230, %v1237
        %v1239 = vmul.f32 %v1238, 0.7978846
        %v1240 = vtanh.pop %v1239
        %v1241 = vadd.f32 %v1240, 1.0
        %v1242 = vmul.f32 %v1241, 0.5
        %v1243 = vmul.f32 %v1230, %v1242
        %v1244 = vpack.c.bf16 %v1243, %v1243
        %v1245 = vld [vmem:[%s498] sm:$0xf]
        %v1246 = vld [vmem:[%s498 + $0x4] sm:$0xf]
        %v1247 = vld [vmem:[%s498 + $0x8] sm:$0xf]
        %v1248 = vld [vmem:[%s498 + $0xc] sm:$0xf]
        %v1249 = vld [vmem:[%s498 + $0x10] sm:$0xf]
        %v1250 = vld [vmem:[%s498 + $0x14] sm:$0xf]
        %v1251 = vld [vmem:[%s498 + $0x18] sm:$0xf]
        %v1252 = vld [vmem:[%s498 + $0x1c] sm:$0xf]
        %v1253 = vld [vmem:[%s498 + $0x20] sm:$0xf]
        %v1254 = vld [vmem:[%s498 + $0x24] sm:$0xf]
        %v1255 = vld [vmem:[%s498 + $0x28] sm:$0xf]
        %v1256 = vld [vmem:[%s498 + $0x2c] sm:$0xf]
        %v1257 = vld [vmem:[%s498 + $0x30] sm:$0xf]
        %v1258 = vld [vmem:[%s498 + $0x34] sm:$0xf]
        %v1259 = vld [vmem:[%s498 + $0x38] sm:$0xf]
        %v1260 = vld [vmem:[%s498 + $0x3c] sm:$0xf]
        %v1261 = vlaneseq
        %v1262 = vshrl.u32 %v1261, 7
        %v1263 = vsub.s32 0, %v1262
        %v1264 = vrot.slane %v522, %v1263
        %v1281 = vunpack.c.l.b16 %v1245
        %v1282 = vunpack.c.l.b16 %v1246
        %v1283 = vunpack.c.l.b16 %v1247
        %v1284 = vunpack.c.l.b16 %v1248
        %v1285 = vunpack.c.l.b16 %v1249
        %v1286 = vunpack.c.l.b16 %v1250
        %v1287 = vunpack.c.l.b16 %v1251
        %v1288 = vunpack.c.l.b16 %v1252
        %v1289 = vunpack.c.l.b16 %v1253
        %v1290 = vunpack.c.l.b16 %v1254
        %v1291 = vunpack.c.l.b16 %v1255
        %v1292 = vunpack.c.l.b16 %v1256
        %v1293 = vunpack.c.l.b16 %v1257
        %v1294 = vunpack.c.l.b16 %v1258
        %v1295 = vunpack.c.l.b16 %v1259
        %v1296 = vunpack.c.l.b16 %v1260
        %v1297 = vpack.c.b16 %v1282, %v1281
        %v1298 = vpack.c.b16 %v1284, %v1283
        %v1299 = vpack.c.b16 %v1286, %v1285
        %v1300 = vpack.c.b16 %v1288, %v1287
        %v1301 = vpack.c.b16 %v1290, %v1289
        %v1302 = vpack.c.b16 %v1292, %v1291
        %v1303 = vpack.c.b16 %v1294, %v1293
        %v1304 = vpack.c.b16 %v1296, %v1295
        %1313 = vmatprep.subr.bf16.mxu0 0
        %1314 = vmatpush1.bf16.msra.mxu0 %v1297
        %1315 = vmatprep.subr.bf16.mxu0 0
        %1316 = vmatpush1.bf16.msra.mxu0 %v1298
        %1317 = vmatprep.subr.bf16.mxu0 0
        %1318 = vmatpush1.bf16.msra.mxu0 %v1299
        %1319 = vmatprep.subr.bf16.mxu0 0
        %1320 = vmatpush1.bf16.msra.mxu0 %v1300
        %1321 = vmatprep.subr.bf16.mxu0 0
        %1322 = vmatpush1.bf16.msra.mxu0 %v1301
        %1323 = vmatprep.subr.bf16.mxu0 0
        %1324 = vmatpush1.bf16.msra.mxu0 %v1302
        %1325 = vmatprep.subr.bf16.mxu0 0
        %1326 = vmatpush1.bf16.msra.mxu0 %v1303
        %1327 = vmatprep.subr.bf16.mxu0 0
        %1328 = vmatpush1.bf16.msra.mxu0 %v1304
        %1329 = vmatprep.subr.bf16.mxu0 0
        %1330 = vmatpush1.bf16.msra.mxu0 0
        %1331 = vmatprep.subr.bf16.mxu0 0
        %1332 = vmatpush1.bf16.msra.mxu0 0
        %1333 = vmatprep.subr.bf16.mxu0 0
        %1334 = vmatpush1.bf16.msra.mxu0 0
        %1335 = vmatprep.subr.bf16.mxu0 0
        %1336 = vmatpush1.bf16.msra.mxu0 0
        %1337 = vmatprep.subr.bf16.mxu0 0
        %1338 = vmatpush1.bf16.msra.mxu0 0
        %1339 = vmatprep.subr.bf16.mxu0 0
        %1340 = vmatpush1.bf16.msra.mxu0 0
        %1341 = vmatprep.subr.bf16.mxu0 0
        %1342 = vmatpush1.bf16.msra.mxu0 0
        %1343 = vmatprep.subr.bf16.mxu0 0
        %1344 = vmatpush1.bf16.msra.mxu0 0
        %1345 = vmatprep.mubr.bf16.mxu0 0
        %1346 = vmatmul.mubr.bf16.gmra.mrb[0].mxu0 %v1244
        %v1347 = vpop.f32.mrb[0].mxu0
        %v1348 = vadd.f32 %v1264, %v1347
        %v1349 = vpop.f32.mrb[0].mxu0
        %v1350 = vpop.f32.mrb[0].mxu0
        %v1351 = vpop.f32.mrb[0].mxu0
        %1352 = vdwg.mxu0
        %v1353 = vadd.f32 %v1144, %v1348
        %p1354 = scmp.lt.s32.totalorder %s29, 1
        // Predicated region
        $region65: #{tpu_custom_call.1} parent=59 // pred_check
          %p1355 = pneg %p1354
        $region66: #{tpu_custom_call.1} parent=59 // pred_check_branch
          %1357 = sbr.rel (%p1355) target = $region68
        $region67: #{tpu_custom_call.1} parent=59 // pred_region
          %1358 = vst.msk [vmem:[%s470] sm:$0xff] %vm526, %v1353
        $region68: #{tpu_custom_call.1} parent=59 // pred_fallthru
          _
        %p1359 = scmp.eq.s32.totalorder %s29, 1
        // Predicated region
        $region69: #{tpu_custom_call.1} parent=59 // pred_check
          %p1360 = pneg %p1359
        $region70: #{tpu_custom_call.1} parent=59 // pred_check_branch
          %1362 = sbr.rel (%p1360) target = $region72
        $region71: #{tpu_custom_call.1} parent=59 // pred_region
          %v1363 = vld [vmem:[%s9] sm:$0x1]
          %v1364 = vld [vmem:[%s9 + $0x1] sm:$0x1]
          %v1365 = vsel %vm526, %v1353, 0.0
          %1366 = vadd.xlane.f32.xlu0 %v1365
          %v1367 = vpop.xlane.xlu0 %1366
          %v1368 = vmul.f32 %v1367, %v530
          %v1369 = vsub.f32 %v1353, %v1368
          %v1370 = vmul.f32 %v1369, %v1369
          %v1371 = vsel %vm526, %v1370, 0.0
          %1372 = vadd.xlane.f32.xlu0 %v1371
          %v1373 = vpop.xlane.xlu0 %1372
          %v1374 = vmul.f32 %v1373, %v530
          %v1375 = vadd.f32 %v1374, 1e-05
          %v1376 = vrsqrt.pop %v1375
          %v1377 = vmul.f32 %v1369, %v1376
          %v1378 = vlaneseq
          %v1379 = vshrl.u32 %v1378, 7
          %v1380 = vsub.s32 0, %v1379
          %v1381 = vrot.slane %v1363, %v1380
          %v1382 = vmul.f32 %v1377, %v1381
          %v1383 = vlaneseq
          %v1384 = vshrl.u32 %v1383, 7
          %v1385 = vsub.s32 0, %v1384
          %v1386 = vrot.slane %v1364, %v1385
          %v1387 = vadd.f32 %v1382, %v1386
          %1388 = vst.msk [vmem:[%s470] sm:$0xff] %vm526, %v1387
        $region72: #{tpu_custom_call.1} parent=59 // pred_fallthru
          _
        %s1389 = sand.u32 %s299, 1
        %s1390 = scalar_lea.sflag [#allocation3], %s1389
        %s1391 = sand.u32 %s299, 1
        %s1392 = smul.addr %s1391, 8
        %s1393 = scalar_lea.vmem [#allocation2], %s1392
        // Predicated region
        $region73: #{tpu_custom_call.1} parent=59 // pred_check
          %p1394 = pneg %p309
        $region74: #{tpu_custom_call.1} parent=59 // pred_check_branch
          %1396 = sbr.rel (%p1394) target = $region76
        $region75: #{tpu_custom_call.1} parent=59 // pred_region
          %s1398 = ssub.s32 128, 128
          %1399 = vsyncadd %s1390, %s1398
          %s1400 = smul.addr %s28, 128
          %s1401 = scalar_lea.hbm %s10, %s1400
          %s1403 = sshll.u32 %s1393, 4
          %s1404 = int_to_ptr.vmem [resolvable:$true] %s1403
          %1406 = dma.vmem_to_hbm [thread:$0]  %s1404, 128, %s1401, %s1390
        $region76: #{tpu_custom_call.1} parent=59 // pred_fallthru
          _
      $region60: #{tpu_custom_call.1} parent=5 // pred_fallthru
        _
      %p1407 = scmp.le.s32.totalorder 2, %s19
      // Predicated region
      $region77: #{tpu_custom_call.1} parent=5 // pred_check
        %p1408 = pneg %p1407
      $region78: #{tpu_custom_call.1} parent=5 // pred_check_branch
        %1410 = sbr.rel (%p1408) target = $region80
      $region79: #{tpu_custom_call.1} parent=5 // pred_region
        %s1411 = ssub.s32 %s19, 2
        // Predicated region
        $region81: #{tpu_custom_call.1} parent=79 // pred_check
          %p1412 = pneg %p315
        $region82: #{tpu_custom_call.1} parent=79 // pred_check_branch
          %1414 = sbr.rel (%p1412) target = $region84
        $region83: #{tpu_custom_call.1} parent=79 // pred_region
          %s1415 = sand.u32 %s300, 1
          %s1416 = scalar_lea.sflag [#allocation3], %s1415
          %s1417 = sand.u32 %s300, 1
          %s1418 = smul.addr %s1417, 8
          %s1419 = scalar_lea.vmem [#allocation2], %s1418
          %1420 = dma.done %s1416, 128
        $region84: #{tpu_custom_call.1} parent=79 // pred_fallthru
          _
      $region80: #{tpu_custom_call.1} parent=5 // pred_fallthru
        _
    $region6: #{tpu_custom_call.1} parent=1 // loop_footer
      %s23 = sadd.s32 1, %s19
    $region7: #{tpu_custom_call.1} parent=1 // loop_footer_branch
      %18 = sbr.rel target = $region3
    $region8: #{tpu_custom_call.1} parent=1 // loop_exit
      _
    %1421 = vsyncpa [#allocation3], 1
    %s1422 = scalar_lea.sflag [#allocation3], 1
    %1423 = vsyncpa %s1422, 1

</llo_original>
